<compile_context>
chip_gen: v7x
topology: tpu7x:2x2x1
jax: 0.10.0
libtpu: 0.0.40
codegen_flags: <defaults>
</compile_context>

<pallas_src>
import numpy as np
import jax
import jax.numpy as jnp
from jax import lax
from jax.experimental import pallas as pl
from jax.experimental.pallas import tpu as pltpu

# ----------------------- small, deterministic config -----------------------
BATCH      = 4
TS_LENGTH  = 8                      # H has TS_LENGTH time steps
NSTEPS     = TS_LENGTH + 1          # history steps + current step
ROWS       = NSTEPS * BATCH         # timestep-major flattening; the w rows come last
DENSE_DIM  = 4                      # dense feature dim fed to DLRM bottom MLP
M_SPA      = 8                      # embedding dim == bottom-MLP output dim
LN_BOT     = [DENSE_DIM, M_SPA]     # DLRM bottom MLP (sigmoid_bot = -1 -> all ReLU)
LN_EMB     = [20, 30]               # two embedding tables
BAG        = 2                      # fixed bag size (lS_o = [0, BAG, 2*BAG, ...])
NUM_TABLES = len(LN_EMB)
NUM_FEAT   = 1 + NUM_TABLES
# dot-interaction lower-triangle pairs, arch_interaction_itself=False: (1,0),(2,0),(2,1)
PAIRS      = tuple((i, j) for i in range(NUM_FEAT) for j in range(i))
NPAIRS     = len(PAIRS)
LN_TOP     = [M_SPA + NPAIRS, 16, 8]      # DLRM top MLP (sigmoid_top = -1 -> all ReLU)
M_TOP      = LN_TOP[-1]                   # m = ln_top[-1]
LN_TSL     = [4]                          # TSL attention MLP hidden sizes
LN_MLP     = [2 * M_TOP, 8, 1]            # per-head MLP on cat([c, w]); ends in sigmoid

_VMEM = pl.BlockSpec(memory_space=pltpu.MemorySpace.VMEM)


# ------------------------------ fused Pallas kernel ------------------------------
def _tbsm_fused_kernel(x_ref, idx0_ref, idx1_ref, tab0_ref, tab1_ref,
                       wbot_ref, bbot_ref,
                       wt1z_ref, wt1p_ref, bt1_ref, wt2_ref, bt2_ref,
                       ata_ref, selrep_ref, selrepT_ref,
                       m1_ref, b1c_ref, m2_ref, b2c_ref,
                       wm1c_ref, wm1w_ref, bm1_ref, wm2_ref, bm2_ref,
                       o_ref):
    """Whole TBSM forward: DLRM over all timesteps (flattened rows) + TSL tail.

    x:(ROWS,dense)  idx_k:(ROWS,BAG) int32  tables:(n_k,M_SPA)
    Matmul weights are pre-transposed to (in,out); the TSL attention MLP is supplied in
    block-diagonal (kron with I_BATCH) form so it acts on the flattened (T*B,1) column.
    """
    f32 = jnp.float32

    # ---- DLRM bottom MLP (single layer, ReLU) over all ROWS at once ----
    x = x_ref[...]                                                    # (ROWS, dense)
    z = jnp.maximum(
        jnp.dot(x, wbot_ref[...], preferred_element_type=f32) + bbot_ref[...], 0.0)

    # ---- EmbeddingBag(sum) as one-hot-with-multiplicity @ table (MXU, no gather) ----
    def embed(idx_ref, tab_ref):
        n_rows = tab_ref.shape[0]
        idx = idx_ref[...]                                            # (ROWS, BAG) int32
        rows = lax.broadcasted_iota(jnp.int32, (ROWS, n_rows), 1)
        oh = jnp.zeros((ROWS, n_rows), f32)
        for g in range(BAG):                                          # BAG == 2, unrolled
            oh = oh + jnp.where(idx[:, g:g + 1] == rows, 1.0, 0.0)
        return jnp.dot(oh, tab_ref[...], preferred_element_type=f32)  # (ROWS, M_SPA)

    ly0 = embed(idx0_ref, tab0_ref)
    ly1 = embed(idx1_ref, tab1_ref)

    # ---- DLRM 'dot' interaction: pair dot-products via lane reductions (no concat) ----
    # pairs (with T = [z, ly0, ly1]): <T1,T0>, <T2,T0>, <T2,T1>
    c01 = jnp.sum(ly0 * z, axis=1, keepdims=True)                     # (ROWS, 1)
    c02 = jnp.sum(ly1 * z, axis=1, keepdims=True)
    c12 = jnp.sum(ly1 * ly0, axis=1, keepdims=True)

    # ---- top MLP layer 1 with pre-split weight (z-half + 3 rank-1 pair rows) ----
    wt1p = wt1p_ref[...]                                              # (NPAIRS, LN_TOP[1])
    p = (jnp.dot(z, wt1z_ref[...], preferred_element_type=f32)
         + c01 * wt1p[0:1, :] + c02 * wt1p[1:2, :] + c12 * wt1p[2:3, :]
         + bt1_ref[...])
    p = jnp.maximum(p, 0.0)
    # ---- top MLP layer 2 (ReLU) ----
    p = jnp.maximum(
        jnp.dot(p, wt2_ref[...], preferred_element_type=f32) + bt2_ref[...], 0.0)

    # ---- fused F.normalize(p, p=2, dim=1): p / max(||p||, 1e-12) via EUP rsqrt ----
    ss = jnp.sum(p * p, axis=1, keepdims=True)
    vh = p * lax.rsqrt(jnp.maximum(ss, 1e-24))                        # (ROWS, M_TOP)

    # ---- TSL tail (tsl_inner='def', dot interaction, mlp attention), fully in VMEM ----
    H = vh[:TS_LENGTH * BATCH]                                        # (T*B, m), t-major
    w = vh[TS_LENGTH * BATCH:]                                        # (B, m)

    # x2_b = (A^T A) w_b  (A^T A precomputed in the wrapper)
    x2 = jnp.dot(w, ata_ref[...], preferred_element_type=f32)         # (B, m)
    # replicate x2 over time with a constant selector matmul: x2r[t*B+b] = x2[b]
    x2r = jnp.dot(selrep_ref[...], x2, preferred_element_type=f32)    # (T*B, m)
    # att[t*B+b] = <H[t,b,:], x2[b,:]>
    att = jnp.sum(H * x2r, axis=1, keepdims=True)                     # (T*B, 1)

    # attention MLP (T -> h -> T per batch elem) as block-diagonal matmuls on the column
    h1 = jnp.maximum(
        jnp.dot(m1_ref[...], att, preferred_element_type=f32) + b1c_ref[...], 0.0)  # (h*B, 1)
    y = jax.nn.sigmoid(
        jnp.dot(m2_ref[...], h1, preferred_element_type=f32) + b2c_ref[...])        # (T*B, 1)

    # context: c[b, :] = sum_t y[t, b] * H[t, b, :]
    c = jnp.dot(selrepT_ref[...], y * H, preferred_element_type=f32)  # (B, m)

    # final per-head MLP on cat([c, w]) -- concat avoided via split first-layer weight
    hm = jnp.maximum(
        jnp.dot(c, wm1c_ref[...], preferred_element_type=f32)
        + jnp.dot(w, wm1w_ref[...], preferred_element_type=f32)
        + bm1_ref[...], 0.0)                                          # (B, LN_MLP[1])
    o_ref[...] = jax.nn.sigmoid(
        jnp.dot(hm, wm2_ref[...], preferred_element_type=f32) + bm2_ref[...])       # (B, 1)


# ------------------------------ pallas_call wrapper ------------------------------
def tbsm_forward(params, x_all, idx_all):
    # flatten timesteps into the matmul row dimension (t-major, w rows last)
    x_flat = x_all.reshape(ROWS, DENSE_DIM)
    idx0 = idx_all[:, 0].reshape(ROWS, BAG)
    idx1 = idx_all[:, 1].reshape(ROWS, BAG)

    ops = (x_flat, idx0, idx1,
           params['emb'][0], params['emb'][1],
           params['bot_w'], params['bot_b'],
           params['top1_wz'], params['top1_wp'], params['top1_b'],
           params['top2_w'], params['top2_b'],
           params['ata'], params['selrep'], params['selrepT'],
           params['tsl_m1'], params['tsl_b1'], params['tsl_m2'], params['tsl_b2'],
           params['mlp1_wc'], params['mlp1_ww'], params['mlp1_b'],
           params['mlp2_w'], params['mlp2_b'])

    return pl.pallas_call(
        _tbsm_fused_kernel,
        out_shape=jax.ShapeDtypeStruct((BATCH, 1), jnp.float32),
        in_specs=[_VMEM] * len(ops),
        out_specs=_VMEM,
    )(*ops)


# ------------------------------ parameters (synthetic, deterministic) ------------------------------
def init_params(key):
    keys = iter(jax.random.split(key, 64))

    def mat(shape, fan_in, fan_out):
        return jax.random.normal(next(keys), shape, jnp.float32) * np.sqrt(2.0 / (fan_in + fan_out))

    def bias(shape, fan):
        return jax.random.normal(next(keys), shape, jnp.float32) * np.sqrt(1.0 / fan)

    params = {}
    # DLRM bottom MLP
    params['bot_w'] = mat((DENSE_DIM, M_SPA), DENSE_DIM, M_SPA)
    params['bot_b'] = bias((1, M_SPA), M_SPA)
    # embedding tables
    params['emb'] = [jax.random.uniform(next(keys), (n, M_SPA), jnp.float32, -0.05, 0.05)
                     for n in LN_EMB]
    # DLRM top MLP: layer-1 weight pre-split into z-part (M_SPA rows) and pair-part (NPAIRS rows)
    params['top1_wz'] = mat((M_SPA, LN_TOP[1]), LN_TOP[0], LN_TOP[1])
    params['top1_wp'] = mat((NPAIRS, LN_TOP[1]), LN_TOP[0], LN_TOP[1])
    params['top1_b'] = bias((1, LN_TOP[1]), LN_TOP[1])
    params['top2_w'] = mat((LN_TOP[1], LN_TOP[2]), LN_TOP[1], LN_TOP[2])
    params['top2_b'] = bias((1, LN_TOP[2]), LN_TOP[2])

    # TSL projection A (tsl_inner='def'); kernel consumes the input-independent A^T A.
    A = mat((M_TOP, M_TOP), M_TOP, M_TOP)
    params['ata'] = jnp.dot(A.T, A)

    # TSL attention MLP ([TS_LENGTH] + LN_TSL + [TS_LENGTH]) in PyTorch (out,in) layout,
    # lifted to block-diagonal form (kron with I_BATCH) so the kernel applies it to the
    # timestep-major flattened (T*B, 1) attention column with no reshape/transpose.
    h = LN_TSL[0]
    w1 = mat((h, TS_LENGTH), TS_LENGTH, h)
    b1 = bias((h, 1), h)
    w2 = mat((TS_LENGTH, h), h, TS_LENGTH)
    b2 = bias((TS_LENGTH, 1), TS_LENGTH)
    eye_b = jnp.eye(BATCH, dtype=jnp.float32)
    ones_b = jnp.ones((BATCH, 1), jnp.float32)
    params['tsl_m1'] = jnp.kron(w1, eye_b)       # (h*B, T*B)
    params['tsl_b1'] = jnp.kron(b1, ones_b)      # (h*B, 1)
    params['tsl_m2'] = jnp.kron(w2, eye_b)       # (T*B, h*B)
    params['tsl_b2'] = jnp.kron(b2, ones_b)      # (T*B, 1)
    # time-replication / batch-gather selectors for the flattened layout
    selrep = jnp.kron(jnp.ones((TS_LENGTH, 1), jnp.float32), eye_b)   # (T*B, B)
    params['selrep'] = selrep
    params['selrepT'] = selrep.T                                      # (B, T*B)

    # Final per-head MLP on cat([c, w]); first-layer weight kept pre-split (c-half, w-half)
    # so the kernel never materializes the concat.  num_mlps == 1 -> no final_mlp.
    hm = LN_MLP[1]
    params['mlp1_wc'] = mat((M_TOP, hm), 2 * M_TOP, hm)
    params['mlp1_ww'] = mat((M_TOP, hm), 2 * M_TOP, hm)
    params['mlp1_b'] = bias((1, hm), hm)
    params['mlp2_w'] = mat((hm, 1), hm, 1)
    params['mlp2_b'] = jax.random.normal(next(keys), (1, 1), jnp.float32)
    return params


# ----------------------------------- main -----------------------------------
if __name__ == "__main__":
    key = jax.random.PRNGKey(0)
    kp, kd, ki = jax.random.split(key, 3)
    params = init_params(kp)

    # dense inputs for all TS_LENGTH+1 timesteps, and sparse indices per table
    x_all = jax.random.normal(kd, (NSTEPS, BATCH, DENSE_DIM), jnp.float32)
    ikeys = jax.random.split(ki, NUM_TABLES)
    idx_all = jnp.stack(
        [jax.random.randint(ikeys[k], (NSTEPS, BATCH, BAG), 0, LN_EMB[k], dtype=jnp.int32)
         for k in range(NUM_TABLES)],
        axis=1)                                   # (NSTEPS, NUM_TABLES, BATCH, BAG)

    fwd = jax.jit(tbsm_forward)
    out = fwd(params, x_all, idx_all)
    jax.block_until_ready(out)
    assert out.shape == (BATCH, 1) and out.dtype == jnp.float32
    # NOTE: the reference TBSM 'dot' TSL interaction applies no 1/sqrt(m) scaling, and
    # neither does this kernel (matches the provided TSL_Net.forward).
    print("KERNEL_OK")
</pallas_src>

<mosaic_0001>
module attributes {stable_mosaic.version = 11 : i64} {
  func.func @_tbsm_fused_kernel(%arg0: memref<36x4xf32, #tpu.memory_space<vmem>>, %arg1: memref<36x2xi32, #tpu.memory_space<vmem>>, %arg2: memref<36x2xi32, #tpu.memory_space<vmem>>, %arg3: memref<20x8xf32, #tpu.memory_space<vmem>>, %arg4: memref<30x8xf32, #tpu.memory_space<vmem>>, %arg5: memref<4x8xf32, #tpu.memory_space<vmem>>, %arg6: memref<1x8xf32, #tpu.memory_space<vmem>>, %arg7: memref<8x16xf32, #tpu.memory_space<vmem>>, %arg8: memref<3x16xf32, #tpu.memory_space<vmem>>, %arg9: memref<1x16xf32, #tpu.memory_space<vmem>>, %arg10: memref<16x8xf32, #tpu.memory_space<vmem>>, %arg11: memref<1x8xf32, #tpu.memory_space<vmem>>, %arg12: memref<8x8xf32, #tpu.memory_space<vmem>>, %arg13: memref<32x4xf32, #tpu.memory_space<vmem>>, %arg14: memref<4x32xf32, #tpu.memory_space<vmem>>, %arg15: memref<16x32xf32, #tpu.memory_space<vmem>>, %arg16: memref<16x1xf32, #tpu.memory_space<vmem>>, %arg17: memref<32x16xf32, #tpu.memory_space<vmem>>, %arg18: memref<32x1xf32, #tpu.memory_space<vmem>>, %arg19: memref<8x8xf32, #tpu.memory_space<vmem>>, %arg20: memref<8x8xf32, #tpu.memory_space<vmem>>, %arg21: memref<1x8xf32, #tpu.memory_space<vmem>>, %arg22: memref<8x1xf32, #tpu.memory_space<vmem>>, %arg23: memref<1x1xf32, #tpu.memory_space<vmem>>, %arg24: memref<4x1xf32, #tpu.memory_space<vmem>>) attributes {dimension_semantics = [], scalar_prefetch = 0 : i64, scratch_operands = 0 : i64, tpu.core_type = #tpu.core_type<tc>} {
    %c0 = arith.constant 0 : index
    %c0_0 = arith.constant 0 : index
    %0 = vector.load %arg0[%c0, %c0_0] : memref<36x4xf32, #tpu.memory_space<vmem>>, vector<36x4xf32>
    %c0_1 = arith.constant 0 : index
    %c0_2 = arith.constant 0 : index
    %1 = vector.load %arg5[%c0_1, %c0_2] : memref<4x8xf32, #tpu.memory_space<vmem>>, vector<4x8xf32>
    %cst = arith.constant dense<0.000000e+00> : vector<36x8xf32>
    %2 = tpu.matmul %0, %1, %cst {dimension_numbers = #tpu.dot_dimension_numbers<[1], [0], [0], [1], [0, 0, 1, 1], [], []>} : vector<36x4xf32>, vector<4x8xf32>, vector<36x8xf32> -> vector<36x8xf32>
    %c0_3 = arith.constant 0 : index
    %c0_4 = arith.constant 0 : index
    %3 = vector.load %arg6[%c0_3, %c0_4] : memref<1x8xf32, #tpu.memory_space<vmem>>, vector<1x8xf32>
    %4 = vector.broadcast %3 : vector<1x8xf32> to vector<36x8xf32>
    %5 = arith.addf %2, %4 : vector<36x8xf32>
    %cst_5 = arith.constant 0.000000e+00 : f32
    %6 = vector.broadcast %cst_5 : f32 to vector<36x8xf32>
    %7 = arith.maximumf %5, %6 : vector<36x8xf32>
    %c0_6 = arith.constant 0 : index
    %c0_7 = arith.constant 0 : index
    %8 = vector.load %arg1[%c0_6, %c0_7] : memref<36x2xi32, #tpu.memory_space<vmem>>, vector<36x2xi32>
    %9 = tpu.iota {dimensions = array<i32: 1>} : vector<36x20xi32>
    %cst_8 = arith.constant 0.000000e+00 : f32
    %10 = vector.broadcast %cst_8 : f32 to vector<36x20xf32>
    %11 = vector.extract_strided_slice %8 {offsets = [0, 0], sizes = [36, 1], strides = [1, 1]} : vector<36x2xi32> to vector<36x1xi32>
    %12 = vector.broadcast %11 : vector<36x1xi32> to vector<36x20xi32>
    %13 = arith.cmpi eq, %12, %9 : vector<36x20xi32>
    %cst_9 = arith.constant 1.000000e+00 : f32
    %cst_10 = arith.constant 0.000000e+00 : f32
    %14 = vector.broadcast %cst_9 : f32 to vector<36x20xf32>
    %15 = vector.broadcast %cst_10 : f32 to vector<36x20xf32>
    %16 = arith.select %13, %14, %15 : vector<36x20xi1>, vector<36x20xf32>
    %17 = arith.addf %10, %16 : vector<36x20xf32>
    %18 = vector.extract_strided_slice %8 {offsets = [0, 1], sizes = [36, 1], strides = [1, 1]} : vector<36x2xi32> to vector<36x1xi32>
    %19 = vector.broadcast %18 : vector<36x1xi32> to vector<36x20xi32>
    %20 = arith.cmpi eq, %19, %9 : vector<36x20xi32>
    %cst_11 = arith.constant 1.000000e+00 : f32
    %cst_12 = arith.constant 0.000000e+00 : f32
    %21 = vector.broadcast %cst_11 : f32 to vector<36x20xf32>
    %22 = vector.broadcast %cst_12 : f32 to vector<36x20xf32>
    %23 = arith.select %20, %21, %22 : vector<36x20xi1>, vector<36x20xf32>
    %24 = arith.addf %17, %23 : vector<36x20xf32>
    %c0_13 = arith.constant 0 : index
    %c0_14 = arith.constant 0 : index
    %25 = vector.load %arg3[%c0_13, %c0_14] : memref<20x8xf32, #tpu.memory_space<vmem>>, vector<20x8xf32>
    %cst_15 = arith.constant dense<0.000000e+00> : vector<36x8xf32>
    %26 = tpu.matmul %24, %25, %cst_15 {dimension_numbers = #tpu.dot_dimension_numbers<[1], [0], [0], [1], [0, 0, 1, 1], [], []>} : vector<36x20xf32>, vector<20x8xf32>, vector<36x8xf32> -> vector<36x8xf32>
    %c0_16 = arith.constant 0 : index
    %c0_17 = arith.constant 0 : index
    %27 = vector.load %arg2[%c0_16, %c0_17] : memref<36x2xi32, #tpu.memory_space<vmem>>, vector<36x2xi32>
    %28 = tpu.iota {dimensions = array<i32: 1>} : vector<36x30xi32>
    %cst_18 = arith.constant 0.000000e+00 : f32
    %29 = vector.broadcast %cst_18 : f32 to vector<36x30xf32>
    %30 = vector.extract_strided_slice %27 {offsets = [0, 0], sizes = [36, 1], strides = [1, 1]} : vector<36x2xi32> to vector<36x1xi32>
    %31 = vector.broadcast %30 : vector<36x1xi32> to vector<36x30xi32>
    %32 = arith.cmpi eq, %31, %28 : vector<36x30xi32>
    %cst_19 = arith.constant 1.000000e+00 : f32
    %cst_20 = arith.constant 0.000000e+00 : f32
    %33 = vector.broadcast %cst_19 : f32 to vector<36x30xf32>
    %34 = vector.broadcast %cst_20 : f32 to vector<36x30xf32>
    %35 = arith.select %32, %33, %34 : vector<36x30xi1>, vector<36x30xf32>
    %36 = arith.addf %29, %35 : vector<36x30xf32>
    %37 = vector.extract_strided_slice %27 {offsets = [0, 1], sizes = [36, 1], strides = [1, 1]} : vector<36x2xi32> to vector<36x1xi32>
    %38 = vector.broadcast %37 : vector<36x1xi32> to vector<36x30xi32>
    %39 = arith.cmpi eq, %38, %28 : vector<36x30xi32>
    %cst_21 = arith.constant 1.000000e+00 : f32
    %cst_22 = arith.constant 0.000000e+00 : f32
    %40 = vector.broadcast %cst_21 : f32 to vector<36x30xf32>
    %41 = vector.broadcast %cst_22 : f32 to vector<36x30xf32>
    %42 = arith.select %39, %40, %41 : vector<36x30xi1>, vector<36x30xf32>
    %43 = arith.addf %36, %42 : vector<36x30xf32>
    %c0_23 = arith.constant 0 : index
    %c0_24 = arith.constant 0 : index
    %44 = vector.load %arg4[%c0_23, %c0_24] : memref<30x8xf32, #tpu.memory_space<vmem>>, vector<30x8xf32>
    %cst_25 = arith.constant dense<0.000000e+00> : vector<36x8xf32>
    %45 = tpu.matmul %43, %44, %cst_25 {dimension_numbers = #tpu.dot_dimension_numbers<[1], [0], [0], [1], [0, 0, 1, 1], [], []>} : vector<36x30xf32>, vector<30x8xf32>, vector<36x8xf32> -> vector<36x8xf32>
    %46 = arith.mulf %26, %7 : vector<36x8xf32>
    %cst_26 = arith.constant dense<0.000000e+00> : vector<36xf32>
    %47 = vector.multi_reduction <add>, %46, %cst_26 [1] : vector<36x8xf32> to vector<36xf32>
    %48 = vector.shape_cast %47 : vector<36xf32> to vector<36x1xf32>
    %49 = arith.mulf %45, %7 : vector<36x8xf32>
    %cst_27 = arith.constant dense<0.000000e+00> : vector<36xf32>
    %50 = vector.multi_reduction <add>, %49, %cst_27 [1] : vector<36x8xf32> to vector<36xf32>
    %51 = vector.shape_cast %50 : vector<36xf32> to vector<36x1xf32>
    %52 = arith.mulf %45, %26 : vector<36x8xf32>
    %cst_28 = arith.constant dense<0.000000e+00> : vector<36xf32>
    %53 = vector.multi_reduction <add>, %52, %cst_28 [1] : vector<36x8xf32> to vector<36xf32>
    %54 = vector.shape_cast %53 : vector<36xf32> to vector<36x1xf32>
    %c0_29 = arith.constant 0 : index
    %c0_30 = arith.constant 0 : index
    %55 = vector.load %arg8[%c0_29, %c0_30] : memref<3x16xf32, #tpu.memory_space<vmem>>, vector<3x16xf32>
    %c0_31 = arith.constant 0 : index
    %c0_32 = arith.constant 0 : index
    %56 = vector.load %arg7[%c0_31, %c0_32] : memref<8x16xf32, #tpu.memory_space<vmem>>, vector<8x16xf32>
    %cst_33 = arith.constant dense<0.000000e+00> : vector<36x16xf32>
    %57 = tpu.matmul %7, %56, %cst_33 {dimension_numbers = #tpu.dot_dimension_numbers<[1], [0], [0], [1], [0, 0, 1, 1], [], []>} : vector<36x8xf32>, vector<8x16xf32>, vector<36x16xf32> -> vector<36x16xf32>
    %58 = vector.extract_strided_slice %55 {offsets = [0, 0], sizes = [1, 16], strides = [1, 1]} : vector<3x16xf32> to vector<1x16xf32>
    %59 = vector.broadcast %48 : vector<36x1xf32> to vector<36x16xf32>
    %60 = vector.broadcast %58 : vector<1x16xf32> to vector<36x16xf32>
    %61 = arith.mulf %59, %60 : vector<36x16xf32>
    %62 = arith.addf %57, %61 : vector<36x16xf32>
    %63 = vector.extract_strided_slice %55 {offsets = [1, 0], sizes = [1, 16], strides = [1, 1]} : vector<3x16xf32> to vector<1x16xf32>
    %64 = vector.broadcast %51 : vector<36x1xf32> to vector<36x16xf32>
    %65 = vector.broadcast %63 : vector<1x16xf32> to vector<36x16xf32>
    %66 = arith.mulf %64, %65 : vector<36x16xf32>
    %67 = arith.addf %62, %66 : vector<36x16xf32>
    %68 = vector.extract_strided_slice %55 {offsets = [2, 0], sizes = [1, 16], strides = [1, 1]} : vector<3x16xf32> to vector<1x16xf32>
    %69 = vector.broadcast %54 : vector<36x1xf32> to vector<36x16xf32>
    %70 = vector.broadcast %68 : vector<1x16xf32> to vector<36x16xf32>
    %71 = arith.mulf %69, %70 : vector<36x16xf32>
    %72 = arith.addf %67, %71 : vector<36x16xf32>
    %c0_34 = arith.constant 0 : index
    %c0_35 = arith.constant 0 : index
    %73 = vector.load %arg9[%c0_34, %c0_35] : memref<1x16xf32, #tpu.memory_space<vmem>>, vector<1x16xf32>
    %74 = vector.broadcast %73 : vector<1x16xf32> to vector<36x16xf32>
    %75 = arith.addf %72, %74 : vector<36x16xf32>
    %cst_36 = arith.constant 0.000000e+00 : f32
    %76 = vector.broadcast %cst_36 : f32 to vector<36x16xf32>
    %77 = arith.maximumf %75, %76 : vector<36x16xf32>
    %c0_37 = arith.constant 0 : index
    %c0_38 = arith.constant 0 : index
    %78 = vector.load %arg10[%c0_37, %c0_38] : memref<16x8xf32, #tpu.memory_space<vmem>>, vector<16x8xf32>
    %cst_39 = arith.constant dense<0.000000e+00> : vector<36x8xf32>
    %79 = tpu.matmul %77, %78, %cst_39 {dimension_numbers = #tpu.dot_dimension_numbers<[1], [0], [0], [1], [0, 0, 1, 1], [], []>} : vector<36x16xf32>, vector<16x8xf32>, vector<36x8xf32> -> vector<36x8xf32>
    %c0_40 = arith.constant 0 : index
    %c0_41 = arith.constant 0 : index
    %80 = vector.load %arg11[%c0_40, %c0_41] : memref<1x8xf32, #tpu.memory_space<vmem>>, vector<1x8xf32>
    %81 = vector.broadcast %80 : vector<1x8xf32> to vector<36x8xf32>
    %82 = arith.addf %79, %81 : vector<36x8xf32>
    %cst_42 = arith.constant 0.000000e+00 : f32
    %83 = vector.broadcast %cst_42 : f32 to vector<36x8xf32>
    %84 = arith.maximumf %82, %83 : vector<36x8xf32>
    %85 = arith.mulf %84, %84 : vector<36x8xf32>
    %cst_43 = arith.constant dense<0.000000e+00> : vector<36xf32>
    %86 = vector.multi_reduction <add>, %85, %cst_43 [1] : vector<36x8xf32> to vector<36xf32>
    %87 = vector.shape_cast %86 : vector<36xf32> to vector<36x1xf32>
    %cst_44 = arith.constant 1.000000e-24 : f32
    %88 = vector.broadcast %cst_44 : f32 to vector<36x1xf32>
    %89 = arith.maximumf %87, %88 : vector<36x1xf32>
    %90 = math.rsqrt %89 : vector<36x1xf32>
    %91 = vector.broadcast %90 : vector<36x1xf32> to vector<36x8xf32>
    %92 = arith.mulf %84, %91 : vector<36x8xf32>
    %93 = vector.extract_strided_slice %92 {offsets = [0, 0], sizes = [32, 8], strides = [1, 1]} : vector<36x8xf32> to vector<32x8xf32>
    %94 = vector.extract_strided_slice %92 {offsets = [32, 0], sizes = [4, 8], strides = [1, 1]} : vector<36x8xf32> to vector<4x8xf32>
    %c0_45 = arith.constant 0 : index
    %c0_46 = arith.constant 0 : index
    %95 = vector.load %arg12[%c0_45, %c0_46] : memref<8x8xf32, #tpu.memory_space<vmem>>, vector<8x8xf32>
    %cst_47 = arith.constant dense<0.000000e+00> : vector<4x8xf32>
    %96 = tpu.matmul %94, %95, %cst_47 {dimension_numbers = #tpu.dot_dimension_numbers<[1], [0], [0], [1], [0, 0, 1, 1], [], []>} : vector<4x8xf32>, vector<8x8xf32>, vector<4x8xf32> -> vector<4x8xf32>
    %c0_48 = arith.constant 0 : index
    %c0_49 = arith.constant 0 : index
    %97 = vector.load %arg13[%c0_48, %c0_49] : memref<32x4xf32, #tpu.memory_space<vmem>>, vector<32x4xf32>
    %cst_50 = arith.constant dense<0.000000e+00> : vector<32x8xf32>
    %98 = tpu.matmul %97, %96, %cst_50 {dimension_numbers = #tpu.dot_dimension_numbers<[1], [0], [0], [1], [0, 0, 1, 1], [], []>} : vector<32x4xf32>, vector<4x8xf32>, vector<32x8xf32> -> vector<32x8xf32>
    %99 = arith.mulf %93, %98 : vector<32x8xf32>
    %cst_51 = arith.constant dense<0.000000e+00> : vector<32xf32>
    %100 = vector.multi_reduction <add>, %99, %cst_51 [1] : vector<32x8xf32> to vector<32xf32>
    %101 = vector.shape_cast %100 : vector<32xf32> to vector<32x1xf32>
    %c0_52 = arith.constant 0 : index
    %c0_53 = arith.constant 0 : index
    %102 = vector.load %arg15[%c0_52, %c0_53] : memref<16x32xf32, #tpu.memory_space<vmem>>, vector<16x32xf32>
    %cst_54 = arith.constant dense<0.000000e+00> : vector<16x1xf32>
    %103 = tpu.matmul %102, %101, %cst_54 {dimension_numbers = #tpu.dot_dimension_numbers<[1], [0], [0], [1], [0, 0, 1, 1], [], []>} : vector<16x32xf32>, vector<32x1xf32>, vector<16x1xf32> -> vector<16x1xf32>
    %c0_55 = arith.constant 0 : index
    %c0_56 = arith.constant 0 : index
    %104 = vector.load %arg16[%c0_55, %c0_56] : memref<16x1xf32, #tpu.memory_space<vmem>>, vector<16x1xf32>
    %105 = arith.addf %103, %104 : vector<16x1xf32>
    %cst_57 = arith.constant 0.000000e+00 : f32
    %106 = vector.broadcast %cst_57 : f32 to vector<16x1xf32>
    %107 = arith.maximumf %105, %106 : vector<16x1xf32>
    %c0_58 = arith.constant 0 : index
    %c0_59 = arith.constant 0 : index
    %108 = vector.load %arg17[%c0_58, %c0_59] : memref<32x16xf32, #tpu.memory_space<vmem>>, vector<32x16xf32>
    %cst_60 = arith.constant dense<0.000000e+00> : vector<32x1xf32>
    %109 = tpu.matmul %108, %107, %cst_60 {dimension_numbers = #tpu.dot_dimension_numbers<[1], [0], [0], [1], [0, 0, 1, 1], [], []>} : vector<32x16xf32>, vector<16x1xf32>, vector<32x1xf32> -> vector<32x1xf32>
    %c0_61 = arith.constant 0 : index
    %c0_62 = arith.constant 0 : index
    %110 = vector.load %arg18[%c0_61, %c0_62] : memref<32x1xf32, #tpu.memory_space<vmem>>, vector<32x1xf32>
    %111 = arith.addf %109, %110 : vector<32x1xf32>
    %112 = arith.negf %111 : vector<32x1xf32>
    %113 = math.exp %112 : vector<32x1xf32>
    %cst_63 = arith.constant 1.000000e+00 : f32
    %114 = vector.broadcast %cst_63 : f32 to vector<32x1xf32>
    %115 = arith.addf %114, %113 : vector<32x1xf32>
    %116 = arith.divf %114, %115 : vector<32x1xf32>
    %c0_64 = arith.constant 0 : index
    %c0_65 = arith.constant 0 : index
    %117 = vector.load %arg14[%c0_64, %c0_65] : memref<4x32xf32, #tpu.memory_space<vmem>>, vector<4x32xf32>
    %118 = vector.broadcast %116 : vector<32x1xf32> to vector<32x8xf32>
    %119 = arith.mulf %118, %93 : vector<32x8xf32>
    %cst_66 = arith.constant dense<0.000000e+00> : vector<4x8xf32>
    %120 = tpu.matmul %117, %119, %cst_66 {dimension_numbers = #tpu.dot_dimension_numbers<[1], [0], [0], [1], [0, 0, 1, 1], [], []>} : vector<4x32xf32>, vector<32x8xf32>, vector<4x8xf32> -> vector<4x8xf32>
    %c0_67 = arith.constant 0 : index
    %c0_68 = arith.constant 0 : index
    %121 = vector.load %arg19[%c0_67, %c0_68] : memref<8x8xf32, #tpu.memory_space<vmem>>, vector<8x8xf32>
    %cst_69 = arith.constant dense<0.000000e+00> : vector<4x8xf32>
    %122 = tpu.matmul %120, %121, %cst_69 {dimension_numbers = #tpu.dot_dimension_numbers<[1], [0], [0], [1], [0, 0, 1, 1], [], []>} : vector<4x8xf32>, vector<8x8xf32>, vector<4x8xf32> -> vector<4x8xf32>
    %c0_70 = arith.constant 0 : index
    %c0_71 = arith.constant 0 : index
    %123 = vector.load %arg20[%c0_70, %c0_71] : memref<8x8xf32, #tpu.memory_space<vmem>>, vector<8x8xf32>
    %cst_72 = arith.constant dense<0.000000e+00> : vector<4x8xf32>
    %124 = tpu.matmul %94, %123, %cst_72 {dimension_numbers = #tpu.dot_dimension_numbers<[1], [0], [0], [1], [0, 0, 1, 1], [], []>} : vector<4x8xf32>, vector<8x8xf32>, vector<4x8xf32> -> vector<4x8xf32>
    %125 = arith.addf %122, %124 : vector<4x8xf32>
    %c0_73 = arith.constant 0 : index
    %c0_74 = arith.constant 0 : index
    %126 = vector.load %arg21[%c0_73, %c0_74] : memref<1x8xf32, #tpu.memory_space<vmem>>, vector<1x8xf32>
    %127 = vector.broadcast %126 : vector<1x8xf32> to vector<4x8xf32>
    %128 = arith.addf %125, %127 : vector<4x8xf32>
    %cst_75 = arith.constant 0.000000e+00 : f32
    %129 = vector.broadcast %cst_75 : f32 to vector<4x8xf32>
    %130 = arith.maximumf %128, %129 : vector<4x8xf32>
    %c0_76 = arith.constant 0 : index
    %c0_77 = arith.constant 0 : index
    %131 = vector.load %arg22[%c0_76, %c0_77] : memref<8x1xf32, #tpu.memory_space<vmem>>, vector<8x1xf32>
    %cst_78 = arith.constant dense<0.000000e+00> : vector<4x1xf32>
    %132 = tpu.matmul %130, %131, %cst_78 {dimension_numbers = #tpu.dot_dimension_numbers<[1], [0], [0], [1], [0, 0, 1, 1], [], []>} : vector<4x8xf32>, vector<8x1xf32>, vector<4x1xf32> -> vector<4x1xf32>
    %c0_79 = arith.constant 0 : index
    %c0_80 = arith.constant 0 : index
    %133 = vector.load %arg23[%c0_79, %c0_80] : memref<1x1xf32, #tpu.memory_space<vmem>>, vector<1x1xf32>
    %134 = vector.broadcast %133 : vector<1x1xf32> to vector<4x1xf32>
    %135 = arith.addf %132, %134 : vector<4x1xf32>
    %136 = arith.negf %135 : vector<4x1xf32>
    %137 = math.exp %136 : vector<4x1xf32>
    %cst_81 = arith.constant 1.000000e+00 : f32
    %138 = vector.broadcast %cst_81 : f32 to vector<4x1xf32>
    %139 = arith.addf %138, %137 : vector<4x1xf32>
    %140 = arith.divf %138, %139 : vector<4x1xf32>
    %c0_82 = arith.constant 0 : index
    %c0_83 = arith.constant 0 : index
    %141 = vector.load %arg24[%c0_82, %c0_83] : memref<4x1xf32, #tpu.memory_space<vmem>>, vector<4x1xf32>
    tpu.vector_store %arg24[%c0_82, %c0_83], %140 {strides = array<i32>} : memref<4x1xf32, #tpu.memory_space<vmem>>, vector<4x1xf32>,
    return
  }
}

</mosaic_0001>

<llo_original>
// kernel: tbsm_forward.1
$region0: #{tbsm_forward.1}
  #allocation0 [shape = 'u32[]', space=smem, size = 0x4, offset = 0x4, fixed_abs, tag = 'smem constant byte address 0x4 - core index']
  #allocation1 [shape = 'u32[144,128]{1,0:T(1,128)}', space=vmem, size = 0x12000, scoped, tag = 'internal scratch']
  #allocation2 [shape = 'f32[1,1]{1,0:T(1,128)S(1)}', space=vmem, size = 0x200, scoped, tag = 'scoped memory for tbsm_forward.1']
  %s0 = inlined_call_operand.vmem [shape: f32[36,4], index: 0, kind: input, shape index: {}]
  %s1 = inlined_call_operand.vmem [shape: s32[36,2], index: 1, kind: input, shape index: {}]
  %s2 = inlined_call_operand.vmem [shape: s32[36,2], index: 2, kind: input, shape index: {}]
  %s3 = inlined_call_operand.vmem [shape: f32[20,8], index: 3, kind: input, shape index: {}]
  %s4 = inlined_call_operand.vmem [shape: f32[30,8], index: 4, kind: input, shape index: {}]
  %s5 = inlined_call_operand.vmem [shape: f32[4,8], index: 5, kind: input, shape index: {}]
  %s6 = inlined_call_operand.vmem [shape: f32[1,8], index: 6, kind: input, shape index: {}]
  %s7 = inlined_call_operand.vmem [shape: f32[8,16], index: 7, kind: input, shape index: {}]
  %s8 = inlined_call_operand.vmem [shape: f32[3,16], index: 8, kind: input, shape index: {}]
  %s9 = inlined_call_operand.vmem [shape: f32[1,16], index: 9, kind: input, shape index: {}]
  %s10 = inlined_call_operand.vmem [shape: f32[16,8], index: 10, kind: input, shape index: {}]
  %s11 = inlined_call_operand.vmem [shape: f32[1,8], index: 11, kind: input, shape index: {}]
  %s12 = inlined_call_operand.vmem [shape: f32[8,8], index: 12, kind: input, shape index: {}]
  %s13 = inlined_call_operand.vmem [shape: f32[32,4], index: 13, kind: input, shape index: {}]
  %s14 = inlined_call_operand.vmem [shape: f32[4,32], index: 14, kind: input, shape index: {}]
  %s15 = inlined_call_operand.vmem [shape: f32[16,32], index: 15, kind: input, shape index: {}]
  %s16 = inlined_call_operand.vmem [shape: f32[16,1], index: 16, kind: input, shape index: {}]
  %s17 = inlined_call_operand.vmem [shape: f32[32,16], index: 17, kind: input, shape index: {}]
  %s18 = inlined_call_operand.vmem [shape: f32[32,1], index: 18, kind: input, shape index: {}]
  %s19 = inlined_call_operand.vmem [shape: f32[8,8], index: 19, kind: input, shape index: {}]
  %s20 = inlined_call_operand.vmem [shape: f32[8,8], index: 20, kind: input, shape index: {}]
  %s21 = inlined_call_operand.vmem [shape: f32[1,8], index: 21, kind: input, shape index: {}]
  %s22 = inlined_call_operand.vmem [shape: f32[8,1], index: 22, kind: input, shape index: {}]
  %s23 = inlined_call_operand.<no memory space> [shape: f32[1,1], index: 23, kind: input, shape index: {}]
  %s24 = inlined_call_operand.vmem [shape: f32[4,1], index: 24, kind: output, shape index: {}]
  %s25 = sld [smem:[#allocation0]]
  $region106: #{tbsm_forward.1} parent=0
    _
  %s27 = ssub.s32 1, %s25
  %s28 = scalar_select 0, %s27, %s25
  %v29 = vstv %s23
  %30 = vst [vmem:[#allocation2] sm:$0x1] %v29
  // Predicated region
  $region2: #{tbsm_forward.1} parent=0 // pred_check
    _
  $region3: #{tbsm_forward.1} parent=0 // pred_check_branch
    %32 = sbr.rel (0) target = $region5
  $region4: #{tbsm_forward.1} parent=0 // pred_region
    _
  $region5: #{tbsm_forward.1} parent=0 // pred_fallthru
    _
  // Predicated region
  $region6: #{tbsm_forward.1} parent=0 // pred_check
    _
  $region7: #{tbsm_forward.1} parent=0 // pred_check_branch
    %34 = sbr.rel (0) target = $region9
  $region8: #{tbsm_forward.1} parent=0 // pred_region
    _
  $region9: #{tbsm_forward.1} parent=0 // pred_fallthru
    _
  // Predicated region
  $region10: #{tbsm_forward.1} parent=0 // pred_check
    _
  $region11: #{tbsm_forward.1} parent=0 // pred_check_branch
    %36 = sbr.rel (0) target = $region13
  $region12: #{tbsm_forward.1} parent=0 // pred_region
    _
  $region13: #{tbsm_forward.1} parent=0 // pred_fallthru
    _
  // Predicated region
  $region14: #{tbsm_forward.1} parent=0 // pred_check
    _
  $region15: #{tbsm_forward.1} parent=0 // pred_check_branch
    %38 = sbr.rel (0) target = $region17
  $region16: #{tbsm_forward.1} parent=0 // pred_region
    _
  $region17: #{tbsm_forward.1} parent=0 // pred_fallthru
    _
  // Predicated region
  $region18: #{tbsm_forward.1} parent=0 // pred_check
    _
  $region19: #{tbsm_forward.1} parent=0 // pred_check_branch
    %40 = sbr.rel (0) target = $region21
  $region20: #{tbsm_forward.1} parent=0 // pred_region
    _
  $region21: #{tbsm_forward.1} parent=0 // pred_fallthru
    _
  // Predicated region
  $region22: #{tbsm_forward.1} parent=0 // pred_check
    _
  $region23: #{tbsm_forward.1} parent=0 // pred_check_branch
    %42 = sbr.rel (0) target = $region25
  $region24: #{tbsm_forward.1} parent=0 // pred_region
    _
  $region25: #{tbsm_forward.1} parent=0 // pred_fallthru
    _
  // Predicated region
  $region26: #{tbsm_forward.1} parent=0 // pred_check
    _
  $region27: #{tbsm_forward.1} parent=0 // pred_check_branch
    %44 = sbr.rel (0) target = $region29
  $region28: #{tbsm_forward.1} parent=0 // pred_region
    _
  $region29: #{tbsm_forward.1} parent=0 // pred_fallthru
    _
  // Predicated region
  $region30: #{tbsm_forward.1} parent=0 // pred_check
    _
  $region31: #{tbsm_forward.1} parent=0 // pred_check_branch
    %46 = sbr.rel (0) target = $region33
  $region32: #{tbsm_forward.1} parent=0 // pred_region
    _
  $region33: #{tbsm_forward.1} parent=0 // pred_fallthru
    _
  // Predicated region
  $region34: #{tbsm_forward.1} parent=0 // pred_check
    _
  $region35: #{tbsm_forward.1} parent=0 // pred_check_branch
    %48 = sbr.rel (0) target = $region37
  $region36: #{tbsm_forward.1} parent=0 // pred_region
    _
  $region37: #{tbsm_forward.1} parent=0 // pred_fallthru
    _
  // Predicated region
  $region38: #{tbsm_forward.1} parent=0 // pred_check
    _
  $region39: #{tbsm_forward.1} parent=0 // pred_check_branch
    %50 = sbr.rel (0) target = $region41
  $region40: #{tbsm_forward.1} parent=0 // pred_region
    _
  $region41: #{tbsm_forward.1} parent=0 // pred_fallthru
    _
  // Predicated region
  $region42: #{tbsm_forward.1} parent=0 // pred_check
    _
  $region43: #{tbsm_forward.1} parent=0 // pred_check_branch
    %52 = sbr.rel (0) target = $region45
  $region44: #{tbsm_forward.1} parent=0 // pred_region
    _
  $region45: #{tbsm_forward.1} parent=0 // pred_fallthru
    _
  // Predicated region
  $region46: #{tbsm_forward.1} parent=0 // pred_check
    _
  $region47: #{tbsm_forward.1} parent=0 // pred_check_branch
    %54 = sbr.rel (0) target = $region49
  $region48: #{tbsm_forward.1} parent=0 // pred_region
    _
  $region49: #{tbsm_forward.1} parent=0 // pred_fallthru
    _
  // Predicated region
  $region50: #{tbsm_forward.1} parent=0 // pred_check
    _
  $region51: #{tbsm_forward.1} parent=0 // pred_check_branch
    %56 = sbr.rel (0) target = $region53
  $region52: #{tbsm_forward.1} parent=0 // pred_region
    _
  $region53: #{tbsm_forward.1} parent=0 // pred_fallthru
    _
  // Predicated region
  $region54: #{tbsm_forward.1} parent=0 // pred_check
    _
  $region55: #{tbsm_forward.1} parent=0 // pred_check_branch
    %58 = sbr.rel (0) target = $region57
  $region56: #{tbsm_forward.1} parent=0 // pred_region
    _
  $region57: #{tbsm_forward.1} parent=0 // pred_fallthru
    _
  // Predicated region
  $region58: #{tbsm_forward.1} parent=0 // pred_check
    _
  $region59: #{tbsm_forward.1} parent=0 // pred_check_branch
    %60 = sbr.rel (0) target = $region61
  $region60: #{tbsm_forward.1} parent=0 // pred_region
    _
  $region61: #{tbsm_forward.1} parent=0 // pred_fallthru
    _
  // Predicated region
  $region62: #{tbsm_forward.1} parent=0 // pred_check
    _
  $region63: #{tbsm_forward.1} parent=0 // pred_check_branch
    %62 = sbr.rel (0) target = $region65
  $region64: #{tbsm_forward.1} parent=0 // pred_region
    _
  $region65: #{tbsm_forward.1} parent=0 // pred_fallthru
    _
  // Predicated region
  $region66: #{tbsm_forward.1} parent=0 // pred_check
    _
  $region67: #{tbsm_forward.1} parent=0 // pred_check_branch
    %64 = sbr.rel (0) target = $region69
  $region68: #{tbsm_forward.1} parent=0 // pred_region
    _
  $region69: #{tbsm_forward.1} parent=0 // pred_fallthru
    _
  // Predicated region
  $region70: #{tbsm_forward.1} parent=0 // pred_check
    _
  $region71: #{tbsm_forward.1} parent=0 // pred_check_branch
    %66 = sbr.rel (0) target = $region73
  $region72: #{tbsm_forward.1} parent=0 // pred_region
    _
  $region73: #{tbsm_forward.1} parent=0 // pred_fallthru
    _
  // Predicated region
  $region74: #{tbsm_forward.1} parent=0 // pred_check
    _
  $region75: #{tbsm_forward.1} parent=0 // pred_check_branch
    %68 = sbr.rel (0) target = $region77
  $region76: #{tbsm_forward.1} parent=0 // pred_region
    _
  $region77: #{tbsm_forward.1} parent=0 // pred_fallthru
    _
  // Predicated region
  $region78: #{tbsm_forward.1} parent=0 // pred_check
    _
  $region79: #{tbsm_forward.1} parent=0 // pred_check_branch
    %70 = sbr.rel (0) target = $region81
  $region80: #{tbsm_forward.1} parent=0 // pred_region
    _
  $region81: #{tbsm_forward.1} parent=0 // pred_fallthru
    _
  // Predicated region
  $region82: #{tbsm_forward.1} parent=0 // pred_check
    _
  $region83: #{tbsm_forward.1} parent=0 // pred_check_branch
    %72 = sbr.rel (0) target = $region85
  $region84: #{tbsm_forward.1} parent=0 // pred_region
    _
  $region85: #{tbsm_forward.1} parent=0 // pred_fallthru
    _
  // Predicated region
  $region86: #{tbsm_forward.1} parent=0 // pred_check
    _
  $region87: #{tbsm_forward.1} parent=0 // pred_check_branch
    %74 = sbr.rel (0) target = $region89
  $region88: #{tbsm_forward.1} parent=0 // pred_region
    _
  $region89: #{tbsm_forward.1} parent=0 // pred_fallthru
    _
  // Predicated region
  $region90: #{tbsm_forward.1} parent=0 // pred_check
    _
  $region91: #{tbsm_forward.1} parent=0 // pred_check_branch
    %76 = sbr.rel (0) target = $region93
  $region92: #{tbsm_forward.1} parent=0 // pred_region
    _
  $region93: #{tbsm_forward.1} parent=0 // pred_fallthru
    _
  // Predicated region
  $region94: #{tbsm_forward.1} parent=0 // pred_check
    _
  $region95: #{tbsm_forward.1} parent=0 // pred_check_branch
    %78 = sbr.rel (0) target = $region97
  $region96: #{tbsm_forward.1} parent=0 // pred_region
    _
  $region97: #{tbsm_forward.1} parent=0 // pred_fallthru
    _
  %v79 = vld [vmem:[%s0] sm:$0xff]
  %v80 = vld [vmem:[%s0 + $0x8] sm:$0xff]
  %v81 = vld [vmem:[%s0 + $0x10] sm:$0xff]
  %v82 = vld [vmem:[%s0 + $0x18] sm:$0xff]
  %v83 = vld [vmem:[%s0 + $0x20] sm:$0xf]
  %v84 = vld [vmem:[%s5] sm:$0xf]
  %v85 = vld [vmem:[%s6] sm:$0x1]
  %v87 = vlaneseq
  %v88 = vshrl.u32 %v87, 7
  %v89 = vsub.s32 0, %v88
  %v90 = vrot.slane %v85, %v89
  %vm92 = vcmask 31744
  %v94 = vsel %vm92, %v79, 0
  %v97 = vsel %vm92, %v80, 0
  %v100 = vsel %vm92, %v81, 0
  %v103 = vsel %vm92, %v82, 0
  %v106 = vsel %vm92, %v83, 0
  %vm108 = vcmask 1043456
  %v110 = vsel %vm108, %v84, 0
  %112 = vmatprep.subr.mxu0 0.0
  %113 = vmatpush1.msra.mxu0 %v110
  %114 = vmatprep.subr.mxu0 0.0
  %115 = vmatpush1.msra.mxu0 0.0
  %116 = vmatprep.subr.mxu0 0.0
  %117 = vmatpush1.msra.mxu0 0.0
  %118 = vmatprep.subr.mxu0 0.0
  %119 = vmatpush1.msra.mxu0 0.0
  %120 = vmatprep.subr.mxu0 0.0
  %121 = vmatpush1.msra.mxu0 0.0
  %122 = vmatprep.subr.mxu0 0.0
  %123 = vmatpush1.msra.mxu0 0.0
  %124 = vmatprep.subr.mxu0 0.0
  %125 = vmatpush1.msra.mxu0 0.0
  %126 = vmatprep.subr.mxu0 0.0
  %127 = vmatpush1.msra.mxu0 0.0
  %128 = vmatprep.subr.mxu0 0.0
  %129 = vmatpush1.msra.mxu0 0.0
  %130 = vmatprep.subr.mxu0 0.0
  %131 = vmatpush1.msra.mxu0 0.0
  %132 = vmatprep.subr.mxu0 0.0
  %133 = vmatpush1.msra.mxu0 0.0
  %134 = vmatprep.subr.mxu0 0.0
  %135 = vmatpush1.msra.mxu0 0.0
  %136 = vmatprep.subr.mxu0 0.0
  %137 = vmatpush1.msra.mxu0 0.0
  %138 = vmatprep.subr.mxu0 0.0
  %139 = vmatpush1.msra.mxu0 0.0
  %140 = vmatprep.subr.mxu0 0.0
  %141 = vmatpush1.msra.mxu0 0.0
  %142 = vmatprep.subr.mxu0 0.0
  %143 = vmatpush1.msra.mxu0 0.0
  %144 = vmatprep.subr.mxu0 0.0
  %145 = vmatpush1.msra.mxu0 0.0
  %146 = vmatprep.subr.mxu0 0.0
  %147 = vmatpush1.msra.mxu0 0.0
  %148 = vmatprep.subr.mxu0 0.0
  %149 = vmatpush1.msra.mxu0 0.0
  %150 = vmatprep.subr.mxu0 0.0
  %151 = vmatpush1.msra.mxu0 0.0
  %152 = vmatprep.subr.mxu0 0.0
  %153 = vmatpush1.msra.mxu0 0.0
  %154 = vmatprep.subr.mxu0 0.0
  %155 = vmatpush1.msra.mxu0 0.0
  %156 = vmatprep.subr.mxu0 0.0
  %157 = vmatpush1.msra.mxu0 0.0
  %158 = vmatprep.subr.mxu0 0.0
  %159 = vmatpush1.msra.mxu0 0.0
  %160 = vmatprep.subr.mxu0 0.0
  %161 = vmatpush1.msra.mxu0 0.0
  %162 = vmatprep.subr.mxu0 0.0
  %163 = vmatpush1.msra.mxu0 0.0
  %164 = vmatprep.subr.mxu0 0.0
  %165 = vmatpush1.msra.mxu0 0.0
  %166 = vmatprep.subr.mxu0 0.0
  %167 = vmatpush1.msra.mxu0 0.0
  %168 = vmatprep.subr.mxu0 0.0
  %169 = vmatpush1.msra.mxu0 0.0
  %170 = vmatprep.subr.mxu0 0.0
  %171 = vmatpush1.msra.mxu0 0.0
  %172 = vmatprep.subr.mxu0 0.0
  %173 = vmatpush1.msra.mxu0 0.0
  %174 = vmatprep.subr.mxu0 0.0
  %175 = vmatpush1.msra.mxu0 0.0
  %176 = vmatprep.mubr.f32.mxu0 0.0
  %177 = vmatmul.mubr.f32.gmra.mrb[0].mxu0 %v94
  %v178 = vpop.f32.mrb[0].mxu0
  %v179 = vadd.f32 %v90, %v178
  %v180 = vpop.f32.mrb[0].mxu0
  %181 = vmatprep.mubr.f32.mxu0 0.0
  %182 = vmatmul.mubr.f32.gmra.mrb[0].mxu0 %v97
  %v183 = vpop.f32.mrb[0].mxu0
  %v184 = vadd.f32 %v90, %v183
  %v185 = vpop.f32.mrb[0].mxu0
  %186 = vmatprep.mubr.f32.mxu0 0.0
  %187 = vmatmul.mubr.f32.gmra.mrb[0].mxu0 %v100
  %v188 = vpop.f32.mrb[0].mxu0
  %v189 = vadd.f32 %v90, %v188
  %v190 = vpop.f32.mrb[0].mxu0
  %191 = vmatprep.mubr.f32.mxu0 0.0
  %192 = vmatmul.mubr.f32.gmra.mrb[0].mxu0 %v103
  %v193 = vpop.f32.mrb[0].mxu0
  %v194 = vadd.f32 %v90, %v193
  %v195 = vpop.f32.mrb[0].mxu0
  %196 = vmatprep.mubr.f32.mxu0 0.0
  %197 = vmatmul.mubr.f32.gmra.mrb[0].mxu0 %v106
  %v198 = vpop.f32.mrb[0].mxu0
  %v199 = vadd.f32 %v90, %v198
  %v200 = vpop.f32.mrb[0].mxu0
  %201 = vdwg.mxu0
  %v202 = vmax.f32 %v179, 0.0
  %v203 = vmax.f32 %v184, 0.0
  %v204 = vmax.f32 %v189, 0.0
  %v205 = vmax.f32 %v194, 0.0
  %v206 = vmax.f32 %v199, 0.0
  %v207 = vld [vmem:[%s1] sm:$0xff]
  %v208 = vld [vmem:[%s1 + $0x8] sm:$0xff]
  %v209 = vld [vmem:[%s1 + $0x10] sm:$0xff]
  %v210 = vld [vmem:[%s1 + $0x18] sm:$0xff]
  %v211 = vld [vmem:[%s1 + $0x20] sm:$0xf]
  %v212 = vlaneseq
  %v213 = vand.u32 %v212, 127
  %214 = vset.pattern.permute.xlu0 0
  %215 = vperm.xlu0 %214, %v207
  %v216 = vpop.permute.xlu0 %215
  %217 = vset.pattern.permute.xlu0 0
  %218 = vperm.xlu0 %217, %v208
  %v219 = vpop.permute.xlu0 %218
  %220 = vset.pattern.permute.xlu0 0
  %221 = vperm.xlu0 %220, %v209
  %v222 = vpop.permute.xlu0 %221
  %223 = vset.pattern.permute.xlu0 0
  %224 = vperm.xlu0 %223, %v210
  %v225 = vpop.permute.xlu0 %224
  %226 = vset.pattern.permute.xlu0 0
  %227 = vperm.xlu0 %226, %v211
  %v228 = vpop.permute.xlu0 %227
  %vm229 = vcmp.eq.s32.totalorder %v216, %v213
  %vm230 = vcmp.eq.s32.totalorder %v219, %v213
  %vm231 = vcmp.eq.s32.totalorder %v222, %v213
  %vm232 = vcmp.eq.s32.totalorder %v225, %v213
  %vm233 = vcmp.eq.s32.totalorder %v228, %v213
  %v234 = vsel %vm229, 1.0, 0.0
  %v235 = vsel %vm230, 1.0, 0.0
  %v236 = vsel %vm231, 1.0, 0.0
  %v237 = vsel %vm232, 1.0, 0.0
  %v238 = vsel %vm233, 1.0, 0.0
  %v239 = vadd.f32 %v234, 0.0
  %v240 = vadd.f32 %v235, 0.0
  %v241 = vadd.f32 %v236, 0.0
  %v242 = vadd.f32 %v237, 0.0
  %v243 = vadd.f32 %v238, 0.0
  %244 = vset.pattern.permute.xlu0 1
  %245 = vperm.xlu0 %244, %v207
  %v246 = vpop.permute.xlu0 %245
  %247 = vset.pattern.permute.xlu0 1
  %248 = vperm.xlu0 %247, %v208
  %v249 = vpop.permute.xlu0 %248
  %250 = vset.pattern.permute.xlu0 1
  %251 = vperm.xlu0 %250, %v209
  %v252 = vpop.permute.xlu0 %251
  %253 = vset.pattern.permute.xlu0 1
  %254 = vperm.xlu0 %253, %v210
  %v255 = vpop.permute.xlu0 %254
  %256 = vset.pattern.permute.xlu0 1
  %257 = vperm.xlu0 %256, %v211
  %v258 = vpop.permute.xlu0 %257
  %vm259 = vcmp.eq.s32.totalorder %v246, %v213
  %vm260 = vcmp.eq.s32.totalorder %v249, %v213
  %vm261 = vcmp.eq.s32.totalorder %v252, %v213
  %vm262 = vcmp.eq.s32.totalorder %v255, %v213
  %vm263 = vcmp.eq.s32.totalorder %v258, %v213
  %v264 = vsel %vm259, 1.0, 0.0
  %v265 = vsel %vm260, 1.0, 0.0
  %v266 = vsel %vm261, 1.0, 0.0
  %v267 = vsel %vm262, 1.0, 0.0
  %v268 = vsel %vm263, 1.0, 0.0
  %v269 = vadd.f32 %v239, %v264
  %v270 = vadd.f32 %v240, %v265
  %v271 = vadd.f32 %v241, %v266
  %v272 = vadd.f32 %v242, %v267
  %v273 = vadd.f32 %v243, %v268
  %v274 = vld [vmem:[%s3] sm:$0xff]
  %v275 = vld [vmem:[%s3 + $0x8] sm:$0xff]
  %v276 = vld [vmem:[%s3 + $0x10] sm:$0xf]
  %vm277 = vcmask 162816
  %v279 = vsel %vm277, %v269, 0
  %v282 = vsel %vm277, %v270, 0
  %v285 = vsel %vm277, %v271, 0
  %v288 = vsel %vm277, %v272, 0
  %v291 = vsel %vm277, %v273, 0
  %v294 = vsel %vm108, %v276, 0
  %296 = vmatprep.subr.mxu0 0.0
  %297 = vmatpush1.msra.mxu0 %v274
  %298 = vmatprep.subr.mxu0 0.0
  %299 = vmatpush1.msra.mxu0 %v275
  %300 = vmatprep.subr.mxu0 0.0
  %301 = vmatpush1.msra.mxu0 %v294
  %302 = vmatprep.subr.mxu0 0.0
  %303 = vmatpush1.msra.mxu0 0.0
  %304 = vmatprep.subr.mxu0 0.0
  %305 = vmatpush1.msra.mxu0 0.0
  %306 = vmatprep.subr.mxu0 0.0
  %307 = vmatpush1.msra.mxu0 0.0
  %308 = vmatprep.subr.mxu0 0.0
  %309 = vmatpush1.msra.mxu0 0.0
  %310 = vmatprep.subr.mxu0 0.0
  %311 = vmatpush1.msra.mxu0 0.0
  %312 = vmatprep.subr.mxu0 0.0
  %313 = vmatpush1.msra.mxu0 0.0
  %314 = vmatprep.subr.mxu0 0.0
  %315 = vmatpush1.msra.mxu0 0.0
  %316 = vmatprep.subr.mxu0 0.0
  %317 = vmatpush1.msra.mxu0 0.0
  %318 = vmatprep.subr.mxu0 0.0
  %319 = vmatpush1.msra.mxu0 0.0
  %320 = vmatprep.subr.mxu0 0.0
  %321 = vmatpush1.msra.mxu0 0.0
  %322 = vmatprep.subr.mxu0 0.0
  %323 = vmatpush1.msra.mxu0 0.0
  %324 = vmatprep.subr.mxu0 0.0
  %325 = vmatpush1.msra.mxu0 0.0
  %326 = vmatprep.subr.mxu0 0.0
  %327 = vmatpush1.msra.mxu0 0.0
  %328 = vmatprep.subr.mxu0 0.0
  %329 = vmatpush1.msra.mxu0 0.0
  %330 = vmatprep.subr.mxu0 0.0
  %331 = vmatpush1.msra.mxu0 0.0
  %332 = vmatprep.subr.mxu0 0.0
  %333 = vmatpush1.msra.mxu0 0.0
  %334 = vmatprep.subr.mxu0 0.0
  %335 = vmatpush1.msra.mxu0 0.0
  %336 = vmatprep.subr.mxu0 0.0
  %337 = vmatpush1.msra.mxu0 0.0
  %338 = vmatprep.subr.mxu0 0.0
  %339 = vmatpush1.msra.mxu0 0.0
  %340 = vmatprep.subr.mxu0 0.0
  %341 = vmatpush1.msra.mxu0 0.0
  %342 = vmatprep.subr.mxu0 0.0
  %343 = vmatpush1.msra.mxu0 0.0
  %344 = vmatprep.subr.mxu0 0.0
  %345 = vmatpush1.msra.mxu0 0.0
  %346 = vmatprep.subr.mxu0 0.0
  %347 = vmatpush1.msra.mxu0 0.0
  %348 = vmatprep.subr.mxu0 0.0
  %349 = vmatpush1.msra.mxu0 0.0
  %350 = vmatprep.subr.mxu0 0.0
  %351 = vmatpush1.msra.mxu0 0.0
  %352 = vmatprep.subr.mxu0 0.0
  %353 = vmatpush1.msra.mxu0 0.0
  %354 = vmatprep.subr.mxu0 0.0
  %355 = vmatpush1.msra.mxu0 0.0
  %356 = vmatprep.subr.mxu0 0.0
  %357 = vmatpush1.msra.mxu0 0.0
  %358 = vmatprep.subr.mxu0 0.0
  %359 = vmatpush1.msra.mxu0 0.0
  %360 = vmatprep.mubr.f32.mxu0 0.0
  %361 = vmatmul.mubr.f32.gmra.mrb[0].mxu0 %v279
  %v362 = vpop.f32.mrb[0].mxu0
  %v363 = vadd.f32 0.0, %v362
  %v364 = vpop.f32.mrb[0].mxu0
  %365 = vmatprep.mubr.f32.mxu0 0.0
  %366 = vmatmul.mubr.f32.gmra.mrb[0].mxu0 %v282
  %v367 = vpop.f32.mrb[0].mxu0
  %v368 = vadd.f32 0.0, %v367
  %v369 = vpop.f32.mrb[0].mxu0
  %370 = vmatprep.mubr.f32.mxu0 0.0
  %371 = vmatmul.mubr.f32.gmra.mrb[0].mxu0 %v285
  %v372 = vpop.f32.mrb[0].mxu0
  %v373 = vadd.f32 0.0, %v372
  %v374 = vpop.f32.mrb[0].mxu0
  %375 = vmatprep.mubr.f32.mxu0 0.0
  %376 = vmatmul.mubr.f32.gmra.mrb[0].mxu0 %v288
  %v377 = vpop.f32.mrb[0].mxu0
  %v378 = vadd.f32 0.0, %v377
  %v379 = vpop.f32.mrb[0].mxu0
  %380 = vmatprep.mubr.f32.mxu0 0.0
  %381 = vmatmul.mubr.f32.gmra.mrb[0].mxu0 %v291
  %v382 = vpop.f32.mrb[0].mxu0
  %v383 = vadd.f32 0.0, %v382
  %v384 = vpop.f32.mrb[0].mxu0
  %385 = vdwg.mxu0
  %v386 = vld [vmem:[%s2] sm:$0xff]
  %v387 = vld [vmem:[%s2 + $0x8] sm:$0xff]
  %v388 = vld [vmem:[%s2 + $0x10] sm:$0xff]
  %v389 = vld [vmem:[%s2 + $0x18] sm:$0xff]
  %v390 = vld [vmem:[%s2 + $0x20] sm:$0xf]
  %391 = vset.pattern.permute.xlu0 0
  %392 = vperm.xlu0 %391, %v386
  %v393 = vpop.permute.xlu0 %392
  %394 = vset.pattern.permute.xlu0 0
  %395 = vperm.xlu0 %394, %v387
  %v396 = vpop.permute.xlu0 %395
  %397 = vset.pattern.permute.xlu0 0
  %398 = vperm.xlu0 %397, %v388
  %v399 = vpop.permute.xlu0 %398
  %400 = vset.pattern.permute.xlu0 0
  %401 = vperm.xlu0 %400, %v389
  %v402 = vpop.permute.xlu0 %401
  %403 = vset.pattern.permute.xlu0 0
  %404 = vperm.xlu0 %403, %v390
  %v405 = vpop.permute.xlu0 %404
  %vm406 = vcmp.eq.s32.totalorder %v393, %v213
  %vm407 = vcmp.eq.s32.totalorder %v396, %v213
  %vm408 = vcmp.eq.s32.totalorder %v399, %v213
  %vm409 = vcmp.eq.s32.totalorder %v402, %v213
  %vm410 = vcmp.eq.s32.totalorder %v405, %v213
  %v411 = vsel %vm406, 1.0, 0.0
  %v412 = vsel %vm407, 1.0, 0.0
  %v413 = vsel %vm408, 1.0, 0.0
  %v414 = vsel %vm409, 1.0, 0.0
  %v415 = vsel %vm410, 1.0, 0.0
  %v416 = vadd.f32 %v411, 0.0
  %v417 = vadd.f32 %v412, 0.0
  %v418 = vadd.f32 %v413, 0.0
  %v419 = vadd.f32 %v414, 0.0
  %v420 = vadd.f32 %v415, 0.0
  %421 = vset.pattern.permute.xlu0 1
  %422 = vperm.xlu0 %421, %v386
  %v423 = vpop.permute.xlu0 %422
  %424 = vset.pattern.permute.xlu0 1
  %425 = vperm.xlu0 %424, %v387
  %v426 = vpop.permute.xlu0 %425
  %427 = vset.pattern.permute.xlu0 1
  %428 = vperm.xlu0 %427, %v388
  %v429 = vpop.permute.xlu0 %428
  %430 = vset.pattern.permute.xlu0 1
  %431 = vperm.xlu0 %430, %v389
  %v432 = vpop.permute.xlu0 %431
  %433 = vset.pattern.permute.xlu0 1
  %434 = vperm.xlu0 %433, %v390
  %v435 = vpop.permute.xlu0 %434
  %vm436 = vcmp.eq.s32.totalorder %v423, %v213
  %vm437 = vcmp.eq.s32.totalorder %v426, %v213
  %vm438 = vcmp.eq.s32.totalorder %v429, %v213
  %vm439 = vcmp.eq.s32.totalorder %v432, %v213
  %vm440 = vcmp.eq.s32.totalorder %v435, %v213
  %v441 = vsel %vm436, 1.0, 0.0
  %v442 = vsel %vm437, 1.0, 0.0
  %v443 = vsel %vm438, 1.0, 0.0
  %v444 = vsel %vm439, 1.0, 0.0
  %v445 = vsel %vm440, 1.0, 0.0
  %v446 = vadd.f32 %v416, %v441
  %v447 = vadd.f32 %v417, %v442
  %v448 = vadd.f32 %v418, %v443
  %v449 = vadd.f32 %v419, %v444
  %v450 = vadd.f32 %v420, %v445
  %v451 = vld [vmem:[%s4] sm:$0xff]
  %v452 = vld [vmem:[%s4 + $0x8] sm:$0xff]
  %v453 = vld [vmem:[%s4 + $0x10] sm:$0xff]
  %v454 = vld [vmem:[%s4 + $0x18] sm:$0x3f]
  %vm455 = vcmask 244736
  %v457 = vsel %vm455, %v446, 0
  %v460 = vsel %vm455, %v447, 0
  %v463 = vsel %vm455, %v448, 0
  %v466 = vsel %vm455, %v449, 0
  %v469 = vsel %vm455, %v450, 0
  %vm471 = vcmask 1045504
  %v473 = vsel %vm471, %v454, 0
  %475 = vmatprep.subr.mxu0 0.0
  %476 = vmatpush1.msra.mxu0 %v451
  %477 = vmatprep.subr.mxu0 0.0
  %478 = vmatpush1.msra.mxu0 %v452
  %479 = vmatprep.subr.mxu0 0.0
  %480 = vmatpush1.msra.mxu0 %v453
  %481 = vmatprep.subr.mxu0 0.0
  %482 = vmatpush1.msra.mxu0 %v473
  %483 = vmatprep.subr.mxu0 0.0
  %484 = vmatpush1.msra.mxu0 0.0
  %485 = vmatprep.subr.mxu0 0.0
  %486 = vmatpush1.msra.mxu0 0.0
  %487 = vmatprep.subr.mxu0 0.0
  %488 = vmatpush1.msra.mxu0 0.0
  %489 = vmatprep.subr.mxu0 0.0
  %490 = vmatpush1.msra.mxu0 0.0
  %491 = vmatprep.subr.mxu0 0.0
  %492 = vmatpush1.msra.mxu0 0.0
  %493 = vmatprep.subr.mxu0 0.0
  %494 = vmatpush1.msra.mxu0 0.0
  %495 = vmatprep.subr.mxu0 0.0
  %496 = vmatpush1.msra.mxu0 0.0
  %497 = vmatprep.subr.mxu0 0.0
  %498 = vmatpush1.msra.mxu0 0.0
  %499 = vmatprep.subr.mxu0 0.0
  %500 = vmatpush1.msra.mxu0 0.0
  %501 = vmatprep.subr.mxu0 0.0
  %502 = vmatpush1.msra.mxu0 0.0
  %503 = vmatprep.subr.mxu0 0.0
  %504 = vmatpush1.msra.mxu0 0.0
  %505 = vmatprep.subr.mxu0 0.0
  %506 = vmatpush1.msra.mxu0 0.0
  %507 = vmatprep.subr.mxu0 0.0
  %508 = vmatpush1.msra.mxu0 0.0
  %509 = vmatprep.subr.mxu0 0.0
  %510 = vmatpush1.msra.mxu0 0.0
  %511 = vmatprep.subr.mxu0 0.0
  %512 = vmatpush1.msra.mxu0 0.0
  %513 = vmatprep.subr.mxu0 0.0
  %514 = vmatpush1.msra.mxu0 0.0
  %515 = vmatprep.subr.mxu0 0.0
  %516 = vmatpush1.msra.mxu0 0.0
  %517 = vmatprep.subr.mxu0 0.0
  %518 = vmatpush1.msra.mxu0 0.0
  %519 = vmatprep.subr.mxu0 0.0
  %520 = vmatpush1.msra.mxu0 0.0
  %521 = vmatprep.subr.mxu0 0.0
  %522 = vmatpush1.msra.mxu0 0.0
  %523 = vmatprep.subr.mxu0 0.0
  %524 = vmatpush1.msra.mxu0 0.0
  %525 = vmatprep.subr.mxu0 0.0
  %526 = vmatpush1.msra.mxu0 0.0
  %527 = vmatprep.subr.mxu0 0.0
  %528 = vmatpush1.msra.mxu0 0.0
  %529 = vmatprep.subr.mxu0 0.0
  %530 = vmatpush1.msra.mxu0 0.0
  %531 = vmatprep.subr.mxu0 0.0
  %532 = vmatpush1.msra.mxu0 0.0
  %533 = vmatprep.subr.mxu0 0.0
  %534 = vmatpush1.msra.mxu0 0.0
  %535 = vmatprep.subr.mxu0 0.0
  %536 = vmatpush1.msra.mxu0 0.0
  %537 = vmatprep.subr.mxu0 0.0
  %538 = vmatpush1.msra.mxu0 0.0
  %539 = vmatprep.mubr.f32.mxu0 0.0
  %540 = vmatmul.mubr.f32.gmra.mrb[0].mxu0 %v457
  %v541 = vpop.f32.mrb[0].mxu0
  %v542 = vadd.f32 0.0, %v541
  %v543 = vpop.f32.mrb[0].mxu0
  %544 = vmatprep.mubr.f32.mxu0 0.0
  %545 = vmatmul.mubr.f32.gmra.mrb[0].mxu0 %v460
  %v546 = vpop.f32.mrb[0].mxu0
  %v547 = vadd.f32 0.0, %v546
  %v548 = vpop.f32.mrb[0].mxu0
  %549 = vmatprep.mubr.f32.mxu0 0.0
  %550 = vmatmul.mubr.f32.gmra.mrb[0].mxu0 %v463
  %v551 = vpop.f32.mrb[0].mxu0
  %v552 = vadd.f32 0.0, %v551
  %v553 = vpop.f32.mrb[0].mxu0
  %554 = vmatprep.mubr.f32.mxu0 0.0
  %555 = vmatmul.mubr.f32.gmra.mrb[0].mxu0 %v466
  %v556 = vpop.f32.mrb[0].mxu0
  %v557 = vadd.f32 0.0, %v556
  %v558 = vpop.f32.mrb[0].mxu0
  %559 = vmatprep.mubr.f32.mxu0 0.0
  %560 = vmatmul.mubr.f32.gmra.mrb[0].mxu0 %v469
  %v561 = vpop.f32.mrb[0].mxu0
  %v562 = vadd.f32 0.0, %v561
  %v563 = vpop.f32.mrb[0].mxu0
  %564 = vdwg.mxu0
  %v565 = vmul.f32 %v363, %v202
  %v566 = vmul.f32 %v368, %v203
  %v567 = vmul.f32 %v373, %v204
  %v568 = vmul.f32 %v378, %v205
  %v569 = vmul.f32 %v383, %v206
  %vm570 = vcmask 64512
  %v571 = vsel %vm570, %v565, 0.0
  %572 = vadd.xlane.f32.xlu0 %v571
  %v573 = vpop.xlane.xlu0 %572
  %v574 = vsel %vm570, %v566, 0.0
  %575 = vadd.xlane.f32.xlu0 %v574
  %v576 = vpop.xlane.xlu0 %575
  %v577 = vsel %vm570, %v567, 0.0
  %578 = vadd.xlane.f32.xlu0 %v577
  %v579 = vpop.xlane.xlu0 %578
  %v580 = vsel %vm570, %v568, 0.0
  %581 = vadd.xlane.f32.xlu0 %v580
  %v582 = vpop.xlane.xlu0 %581
  %vm583 = vcmask 60416
  %v584 = vsel %vm583, %v569, 0.0
  %585 = vadd.xlane.f32.xlu0 %v584
  %v586 = vpop.xlane.xlu0 %585
  %v587 = vmul.f32 %v542, %v202
  %v588 = vmul.f32 %v547, %v203
  %v589 = vmul.f32 %v552, %v204
  %v590 = vmul.f32 %v557, %v205
  %v591 = vmul.f32 %v562, %v206
  %v592 = vsel %vm570, %v587, 0.0
  %593 = vadd.xlane.f32.xlu0 %v592
  %v594 = vpop.xlane.xlu0 %593
  %v595 = vsel %vm570, %v588, 0.0
  %596 = vadd.xlane.f32.xlu0 %v595
  %v597 = vpop.xlane.xlu0 %596
  %v598 = vsel %vm570, %v589, 0.0
  %599 = vadd.xlane.f32.xlu0 %v598
  %v600 = vpop.xlane.xlu0 %599
  %v601 = vsel %vm570, %v590, 0.0
  %602 = vadd.xlane.f32.xlu0 %v601
  %v603 = vpop.xlane.xlu0 %602
  %v604 = vsel %vm583, %v591, 0.0
  %605 = vadd.xlane.f32.xlu0 %v604
  %v606 = vpop.xlane.xlu0 %605
  %v607 = vmul.f32 %v542, %v363
  %v608 = vmul.f32 %v547, %v368
  %v609 = vmul.f32 %v552, %v373
  %v610 = vmul.f32 %v557, %v378
  %v611 = vmul.f32 %v562, %v383
  %v612 = vsel %vm570, %v607, 0.0
  %613 = vadd.xlane.f32.xlu0 %v612
  %v614 = vpop.xlane.xlu0 %613
  %v615 = vsel %vm570, %v608, 0.0
  %616 = vadd.xlane.f32.xlu0 %v615
  %v617 = vpop.xlane.xlu0 %616
  %v618 = vsel %vm570, %v609, 0.0
  %619 = vadd.xlane.f32.xlu0 %v618
  %v620 = vpop.xlane.xlu0 %619
  %v621 = vsel %vm570, %v610, 0.0
  %622 = vadd.xlane.f32.xlu0 %v621
  %v623 = vpop.xlane.xlu0 %622
  %v624 = vsel %vm583, %v611, 0.0
  %625 = vadd.xlane.f32.xlu0 %v624
  %v626 = vpop.xlane.xlu0 %625
  %v627 = vld [vmem:[%s8] sm:$0x7]
  %v628 = vld [vmem:[%s7] sm:$0xff]
  %v629 = vlaneseq
  %v630 = vshrl.u32 %v629, 7
  %v631 = vsub.s32 0, %v630
  %v632 = vrot.slane %v627, %v631
  %v633 = vmul.f32 %v573, %v632
  %v634 = vmul.f32 %v576, %v632
  %v635 = vmul.f32 %v579, %v632
  %v636 = vmul.f32 %v582, %v632
  %v637 = vmul.f32 %v586, %v632
  %v639 = vsel %vm570, %v202, 0
  %v642 = vsel %vm570, %v203, 0
  %v645 = vsel %vm570, %v204, 0
  %v648 = vsel %vm570, %v205, 0
  %v651 = vsel %vm570, %v206, 0
  %653 = vmatprep.subr.mxu0 0.0
  %654 = vmatpush1.msra.mxu0 %v628
  %655 = vmatprep.subr.mxu0 0.0
  %656 = vmatpush1.msra.mxu0 0.0
  %657 = vmatprep.subr.mxu0 0.0
  %658 = vmatpush1.msra.mxu0 0.0
  %659 = vmatprep.subr.mxu0 0.0
  %660 = vmatpush1.msra.mxu0 0.0
  %661 = vmatprep.subr.mxu0 0.0
  %662 = vmatpush1.msra.mxu0 0.0
  %663 = vmatprep.subr.mxu0 0.0
  %664 = vmatpush1.msra.mxu0 0.0
  %665 = vmatprep.subr.mxu0 0.0
  %666 = vmatpush1.msra.mxu0 0.0
  %667 = vmatprep.subr.mxu0 0.0
  %668 = vmatpush1.msra.mxu0 0.0
  %669 = vmatprep.subr.mxu0 0.0
  %670 = vmatpush1.msra.mxu0 0.0
  %671 = vmatprep.subr.mxu0 0.0
  %672 = vmatpush1.msra.mxu0 0.0
  %673 = vmatprep.subr.mxu0 0.0
  %674 = vmatpush1.msra.mxu0 0.0
  %675 = vmatprep.subr.mxu0 0.0
  %676 = vmatpush1.msra.mxu0 0.0
  %677 = vmatprep.subr.mxu0 0.0
  %678 = vmatpush1.msra.mxu0 0.0
  %679 = vmatprep.subr.mxu0 0.0
  %680 = vmatpush1.msra.mxu0 0.0
  %681 = vmatprep.subr.mxu0 0.0
  %682 = vmatpush1.msra.mxu0 0.0
  %683 = vmatprep.subr.mxu0 0.0
  %684 = vmatpush1.msra.mxu0 0.0
  %685 = vmatprep.subr.mxu0 0.0
  %686 = vmatpush1.msra.mxu0 0.0
  %687 = vmatprep.subr.mxu0 0.0
  %688 = vmatpush1.msra.mxu0 0.0
  %689 = vmatprep.subr.mxu0 0.0
  %690 = vmatpush1.msra.mxu0 0.0
  %691 = vmatprep.subr.mxu0 0.0
  %692 = vmatpush1.msra.mxu0 0.0
  %693 = vmatprep.subr.mxu0 0.0
  %694 = vmatpush1.msra.mxu0 0.0
  %695 = vmatprep.subr.mxu0 0.0
  %696 = vmatpush1.msra.mxu0 0.0
  %697 = vmatprep.subr.mxu0 0.0
  %698 = vmatpush1.msra.mxu0 0.0
  %699 = vmatprep.subr.mxu0 0.0
  %700 = vmatpush1.msra.mxu0 0.0
  %701 = vmatprep.subr.mxu0 0.0
  %702 = vmatpush1.msra.mxu0 0.0
  %703 = vmatprep.subr.mxu0 0.0
  %704 = vmatpush1.msra.mxu0 0.0
  %705 = vmatprep.subr.mxu0 0.0
  %706 = vmatpush1.msra.mxu0 0.0
  %707 = vmatprep.subr.mxu0 0.0
  %708 = vmatpush1.msra.mxu0 0.0
  %709 = vmatprep.subr.mxu0 0.0
  %710 = vmatpush1.msra.mxu0 0.0
  %711 = vmatprep.subr.mxu0 0.0
  %712 = vmatpush1.msra.mxu0 0.0
  %713 = vmatprep.subr.mxu0 0.0
  %714 = vmatpush1.msra.mxu0 0.0
  %715 = vmatprep.subr.mxu0 0.0
  %716 = vmatpush1.msra.mxu0 0.0
  %717 = vmatprep.mubr.f32.mxu0 0.0
  %718 = vmatmul.mubr.f32.gmra.mrb[0].mxu0 %v639
  %v719 = vpop.f32.mrb[0].mxu0
  %v720 = vadd.f32 %v633, %v719
  %v721 = vpop.f32.mrb[0].mxu0
  %722 = vmatprep.mubr.f32.mxu0 0.0
  %723 = vmatmul.mubr.f32.gmra.mrb[0].mxu0 %v642
  %v724 = vpop.f32.mrb[0].mxu0
  %v725 = vadd.f32 %v634, %v724
  %v726 = vpop.f32.mrb[0].mxu0
  %727 = vmatprep.mubr.f32.mxu0 0.0
  %728 = vmatmul.mubr.f32.gmra.mrb[0].mxu0 %v645
  %v729 = vpop.f32.mrb[0].mxu0
  %v730 = vadd.f32 %v635, %v729
  %v731 = vpop.f32.mrb[0].mxu0
  %732 = vmatprep.mubr.f32.mxu0 0.0
  %733 = vmatmul.mubr.f32.gmra.mrb[0].mxu0 %v648
  %v734 = vpop.f32.mrb[0].mxu0
  %v735 = vadd.f32 %v636, %v734
  %v736 = vpop.f32.mrb[0].mxu0
  %737 = vmatprep.mubr.f32.mxu0 0.0
  %738 = vmatmul.mubr.f32.gmra.mrb[0].mxu0 %v651
  %v739 = vpop.f32.mrb[0].mxu0
  %v740 = vadd.f32 %v637, %v739
  %v741 = vpop.f32.mrb[0].mxu0
  %742 = vdwg.mxu0
  %v743 = vlaneseq
  %v744 = vshrl.u32 %v743, 7
  %v745 = vsub.s32 1, %v744
  %v746 = vrot.slane %v627, %v745
  %v747 = vmul.f32 %v594, %v746
  %v748 = vmul.f32 %v597, %v746
  %v749 = vmul.f32 %v600, %v746
  %v750 = vmul.f32 %v603, %v746
  %v751 = vmul.f32 %v606, %v746
  %v752 = vadd.f32 %v720, %v747
  %v753 = vadd.f32 %v725, %v748
  %v754 = vadd.f32 %v730, %v749
  %v755 = vadd.f32 %v735, %v750
  %v756 = vadd.f32 %v740, %v751
  %v757 = vlaneseq
  %v758 = vshrl.u32 %v757, 7
  %v759 = vsub.s32 2, %v758
  %v760 = vrot.slane %v627, %v759
  %v761 = vmul.f32 %v614, %v760
  %v762 = vmul.f32 %v617, %v760
  %v763 = vmul.f32 %v620, %v760
  %v764 = vmul.f32 %v623, %v760
  %v765 = vmul.f32 %v626, %v760
  %v766 = vadd.f32 %v752, %v761
  %v767 = vadd.f32 %v753, %v762
  %v768 = vadd.f32 %v754, %v763
  %v769 = vadd.f32 %v755, %v764
  %v770 = vadd.f32 %v756, %v765
  %v771 = vld [vmem:[%s9] sm:$0x1]
  %v773 = vlaneseq
  %v774 = vshrl.u32 %v773, 7
  %v775 = vsub.s32 0, %v774
  %v776 = vrot.slane %v771, %v775
  %v778 = vadd.f32 %v766, %v776
  %v779 = vadd.f32 %v767, %v776
  %v780 = vadd.f32 %v768, %v776
  %v781 = vadd.f32 %v769, %v776
  %v782 = vadd.f32 %v770, %v776
  %v783 = vmax.f32 %v778, 0.0
  %v784 = vmax.f32 %v779, 0.0
  %v785 = vmax.f32 %v780, 0.0
  %v786 = vmax.f32 %v781, 0.0
  %v787 = vmax.f32 %v782, 0.0
  %v788 = vld [vmem:[%s10] sm:$0xff]
  %v789 = vld [vmem:[%s10 + $0x8] sm:$0xff]
  %v790 = vld [vmem:[%s11] sm:$0x1]
  %v792 = vlaneseq
  %v793 = vshrl.u32 %v792, 7
  %v794 = vsub.s32 0, %v793
  %v795 = vrot.slane %v790, %v794
  %vm797 = vcmask 130048
  %v799 = vsel %vm797, %v783, 0
  %v802 = vsel %vm797, %v784, 0
  %v805 = vsel %vm797, %v785, 0
  %v808 = vsel %vm797, %v786, 0
  %v811 = vsel %vm797, %v787, 0
  %813 = vmatprep.subr.mxu0 0.0
  %814 = vmatpush1.msra.mxu0 %v788
  %815 = vmatprep.subr.mxu0 0.0
  %816 = vmatpush1.msra.mxu0 %v789
  %817 = vmatprep.subr.mxu0 0.0
  %818 = vmatpush1.msra.mxu0 0.0
  %819 = vmatprep.subr.mxu0 0.0
  %820 = vmatpush1.msra.mxu0 0.0
  %821 = vmatprep.subr.mxu0 0.0
  %822 = vmatpush1.msra.mxu0 0.0
  %823 = vmatprep.subr.mxu0 0.0
  %824 = vmatpush1.msra.mxu0 0.0
  %825 = vmatprep.subr.mxu0 0.0
  %826 = vmatpush1.msra.mxu0 0.0
  %827 = vmatprep.subr.mxu0 0.0
  %828 = vmatpush1.msra.mxu0 0.0
  %829 = vmatprep.subr.mxu0 0.0
  %830 = vmatpush1.msra.mxu0 0.0
  %831 = vmatprep.subr.mxu0 0.0
  %832 = vmatpush1.msra.mxu0 0.0
  %833 = vmatprep.subr.mxu0 0.0
  %834 = vmatpush1.msra.mxu0 0.0
  %835 = vmatprep.subr.mxu0 0.0
  %836 = vmatpush1.msra.mxu0 0.0
  %837 = vmatprep.subr.mxu0 0.0
  %838 = vmatpush1.msra.mxu0 0.0
  %839 = vmatprep.subr.mxu0 0.0
  %840 = vmatpush1.msra.mxu0 0.0
  %841 = vmatprep.subr.mxu0 0.0
  %842 = vmatpush1.msra.mxu0 0.0
  %843 = vmatprep.subr.mxu0 0.0
  %844 = vmatpush1.msra.mxu0 0.0
  %845 = vmatprep.subr.mxu0 0.0
  %846 = vmatpush1.msra.mxu0 0.0
  %847 = vmatprep.subr.mxu0 0.0
  %848 = vmatpush1.msra.mxu0 0.0
  %849 = vmatprep.subr.mxu0 0.0
  %850 = vmatpush1.msra.mxu0 0.0
  %851 = vmatprep.subr.mxu0 0.0
  %852 = vmatpush1.msra.mxu0 0.0
  %853 = vmatprep.subr.mxu0 0.0
  %854 = vmatpush1.msra.mxu0 0.0
  %855 = vmatprep.subr.mxu0 0.0
  %856 = vmatpush1.msra.mxu0 0.0
  %857 = vmatprep.subr.mxu0 0.0
  %858 = vmatpush1.msra.mxu0 0.0
  %859 = vmatprep.subr.mxu0 0.0
  %860 = vmatpush1.msra.mxu0 0.0
  %861 = vmatprep.subr.mxu0 0.0
  %862 = vmatpush1.msra.mxu0 0.0
  %863 = vmatprep.subr.mxu0 0.0
  %864 = vmatpush1.msra.mxu0 0.0
  %865 = vmatprep.subr.mxu0 0.0
  %866 = vmatpush1.msra.mxu0 0.0
  %867 = vmatprep.subr.mxu0 0.0
  %868 = vmatpush1.msra.mxu0 0.0
  %869 = vmatprep.subr.mxu0 0.0
  %870 = vmatpush1.msra.mxu0 0.0
  %871 = vmatprep.subr.mxu0 0.0
  %872 = vmatpush1.msra.mxu0 0.0
  %873 = vmatprep.subr.mxu0 0.0
  %874 = vmatpush1.msra.mxu0 0.0
  %875 = vmatprep.subr.mxu0 0.0
  %876 = vmatpush1.msra.mxu0 0.0
  %877 = vmatprep.mubr.f32.mxu0 0.0
  %878 = vmatmul.mubr.f32.gmra.mrb[0].mxu0 %v799
  %v879 = vpop.f32.mrb[0].mxu0
  %v880 = vadd.f32 %v795, %v879
  %v881 = vpop.f32.mrb[0].mxu0
  %882 = vmatprep.mubr.f32.mxu0 0.0
  %883 = vmatmul.mubr.f32.gmra.mrb[0].mxu0 %v802
  %v884 = vpop.f32.mrb[0].mxu0
  %v885 = vadd.f32 %v795, %v884
  %v886 = vpop.f32.mrb[0].mxu0
  %887 = vmatprep.mubr.f32.mxu0 0.0
  %888 = vmatmul.mubr.f32.gmra.mrb[0].mxu0 %v805
  %v889 = vpop.f32.mrb[0].mxu0
  %v890 = vadd.f32 %v795, %v889
  %v891 = vpop.f32.mrb[0].mxu0
  %892 = vmatprep.mubr.f32.mxu0 0.0
  %893 = vmatmul.mubr.f32.gmra.mrb[0].mxu0 %v808
  %v894 = vpop.f32.mrb[0].mxu0
  %v895 = vadd.f32 %v795, %v894
  %v896 = vpop.f32.mrb[0].mxu0
  %897 = vmatprep.mubr.f32.mxu0 0.0
  %898 = vmatmul.mubr.f32.gmra.mrb[0].mxu0 %v811
  %v899 = vpop.f32.mrb[0].mxu0
  %v900 = vadd.f32 %v795, %v899
  %v901 = vpop.f32.mrb[0].mxu0
  %902 = vdwg.mxu0
  %v903 = vmax.f32 %v880, 0.0
  %v904 = vmax.f32 %v885, 0.0
  %v905 = vmax.f32 %v890, 0.0
  %v906 = vmax.f32 %v895, 0.0
  %v907 = vmax.f32 %v900, 0.0
  %v908 = vmul.f32 %v903, %v903
  %v909 = vmul.f32 %v904, %v904
  %v910 = vmul.f32 %v905, %v905
  %v911 = vmul.f32 %v906, %v906
  %v912 = vmul.f32 %v907, %v907
  %v913 = vsel %vm570, %v908, 0.0
  %914 = vadd.xlane.f32.xlu0 %v913
  %v915 = vpop.xlane.xlu0 %914
  %v916 = vsel %vm570, %v909, 0.0
  %917 = vadd.xlane.f32.xlu0 %v916
  %v918 = vpop.xlane.xlu0 %917
  %v919 = vsel %vm570, %v910, 0.0
  %920 = vadd.xlane.f32.xlu0 %v919
  %v921 = vpop.xlane.xlu0 %920
  %v922 = vsel %vm570, %v911, 0.0
  %923 = vadd.xlane.f32.xlu0 %v922
  %v924 = vpop.xlane.xlu0 %923
  %v925 = vsel %vm583, %v912, 0.0
  %926 = vadd.xlane.f32.xlu0 %v925
  %v927 = vpop.xlane.xlu0 %926
  %v928 = vmax.f32 %v915, 1e-24
  %v929 = vmax.f32 %v918, 1e-24
  %v930 = vmax.f32 %v921, 1e-24
  %v931 = vmax.f32 %v924, 1e-24
  %v932 = vmax.f32 %v927, 1e-24
  %v933 = vrsqrt.pop %v928
  %v934 = vrsqrt.pop %v929
  %v935 = vrsqrt.pop %v930
  %v936 = vrsqrt.pop %v931
  %v937 = vrsqrt.pop %v932
  %v938 = vmul.f32 %v903, %v933
  %v939 = vmul.f32 %v904, %v934
  %v940 = vmul.f32 %v905, %v935
  %v941 = vmul.f32 %v906, %v936
  %v942 = vmul.f32 %v907, %v937
  %v943 = vld [vmem:[%s12] sm:$0xff]
  %v945 = vsel %vm570, %v942, 0
  %947 = vmatprep.subr.mxu0 0.0
  %948 = vmatpush1.msra.mxu0 %v943
  %949 = vmatprep.subr.mxu0 0.0
  %950 = vmatpush1.msra.mxu0 0.0
  %951 = vmatprep.subr.mxu0 0.0
  %952 = vmatpush1.msra.mxu0 0.0
  %953 = vmatprep.subr.mxu0 0.0
  %954 = vmatpush1.msra.mxu0 0.0
  %955 = vmatprep.subr.mxu0 0.0
  %956 = vmatpush1.msra.mxu0 0.0
  %957 = vmatprep.subr.mxu0 0.0
  %958 = vmatpush1.msra.mxu0 0.0
  %959 = vmatprep.subr.mxu0 0.0
  %960 = vmatpush1.msra.mxu0 0.0
  %961 = vmatprep.subr.mxu0 0.0
  %962 = vmatpush1.msra.mxu0 0.0
  %963 = vmatprep.subr.mxu0 0.0
  %964 = vmatpush1.msra.mxu0 0.0
  %965 = vmatprep.subr.mxu0 0.0
  %966 = vmatpush1.msra.mxu0 0.0
  %967 = vmatprep.subr.mxu0 0.0
  %968 = vmatpush1.msra.mxu0 0.0
  %969 = vmatprep.subr.mxu0 0.0
  %970 = vmatpush1.msra.mxu0 0.0
  %971 = vmatprep.subr.mxu0 0.0
  %972 = vmatpush1.msra.mxu0 0.0
  %973 = vmatprep.subr.mxu0 0.0
  %974 = vmatpush1.msra.mxu0 0.0
  %975 = vmatprep.subr.mxu0 0.0
  %976 = vmatpush1.msra.mxu0 0.0
  %977 = vmatprep.subr.mxu0 0.0
  %978 = vmatpush1.msra.mxu0 0.0
  %979 = vmatprep.subr.mxu0 0.0
  %980 = vmatpush1.msra.mxu0 0.0
  %981 = vmatprep.subr.mxu0 0.0
  %982 = vmatpush1.msra.mxu0 0.0
  %983 = vmatprep.subr.mxu0 0.0
  %984 = vmatpush1.msra.mxu0 0.0
  %985 = vmatprep.subr.mxu0 0.0
  %986 = vmatpush1.msra.mxu0 0.0
  %987 = vmatprep.subr.mxu0 0.0
  %988 = vmatpush1.msra.mxu0 0.0
  %989 = vmatprep.subr.mxu0 0.0
  %990 = vmatpush1.msra.mxu0 0.0
  %991 = vmatprep.subr.mxu0 0.0
  %992 = vmatpush1.msra.mxu0 0.0
  %993 = vmatprep.subr.mxu0 0.0
  %994 = vmatpush1.msra.mxu0 0.0
  %995 = vmatprep.subr.mxu0 0.0
  %996 = vmatpush1.msra.mxu0 0.0
  %997 = vmatprep.subr.mxu0 0.0
  %998 = vmatpush1.msra.mxu0 0.0
  %999 = vmatprep.subr.mxu0 0.0
  %1000 = vmatpush1.msra.mxu0 0.0
  %1001 = vmatprep.subr.mxu0 0.0
  %1002 = vmatpush1.msra.mxu0 0.0
  %1003 = vmatprep.subr.mxu0 0.0
  %1004 = vmatpush1.msra.mxu0 0.0
  %1005 = vmatprep.subr.mxu0 0.0
  %1006 = vmatpush1.msra.mxu0 0.0
  %1007 = vmatprep.subr.mxu0 0.0
  %1008 = vmatpush1.msra.mxu0 0.0
  %1009 = vmatprep.subr.mxu0 0.0
  %1010 = vmatpush1.msra.mxu0 0.0
  %1011 = vmatprep.mubr.f32.mxu0 0.0
  %1012 = vmatmul.mubr.f32.gmra.mrb[0].mxu0 %v945
  %v1013 = vpop.f32.mrb[0].mxu0
  %v1014 = vadd.f32 0.0, %v1013
  %v1015 = vpop.f32.mrb[0].mxu0
  %1016 = vdwg.mxu0
  %v1017 = vld [vmem:[%s13] sm:$0xff]
  %v1018 = vld [vmem:[%s13 + $0x8] sm:$0xff]
  %v1019 = vld [vmem:[%s13 + $0x10] sm:$0xff]
  %v1020 = vld [vmem:[%s13 + $0x18] sm:$0xff]
  %v1022 = vsel %vm92, %v1017, 0
  %v1025 = vsel %vm92, %v1018, 0
  %v1028 = vsel %vm92, %v1019, 0
  %v1031 = vsel %vm92, %v1020, 0
  %v1034 = vsel %vm108, %v1014, 0
  %1036 = vmatprep.subr.mxu0 0.0
  %1037 = vmatpush1.msra.mxu0 %v1034
  %1038 = vmatprep.subr.mxu0 0.0
  %1039 = vmatpush1.msra.mxu0 0.0
  %1040 = vmatprep.subr.mxu0 0.0
  %1041 = vmatpush1.msra.mxu0 0.0
  %1042 = vmatprep.subr.mxu0 0.0
  %1043 = vmatpush1.msra.mxu0 0.0
  %1044 = vmatprep.subr.mxu0 0.0
  %1045 = vmatpush1.msra.mxu0 0.0
  %1046 = vmatprep.subr.mxu0 0.0
  %1047 = vmatpush1.msra.mxu0 0.0
  %1048 = vmatprep.subr.mxu0 0.0
  %1049 = vmatpush1.msra.mxu0 0.0
  %1050 = vmatprep.subr.mxu0 0.0
  %1051 = vmatpush1.msra.mxu0 0.0
  %1052 = vmatprep.subr.mxu0 0.0
  %1053 = vmatpush1.msra.mxu0 0.0
  %1054 = vmatprep.subr.mxu0 0.0
  %1055 = vmatpush1.msra.mxu0 0.0
  %1056 = vmatprep.subr.mxu0 0.0
  %1057 = vmatpush1.msra.mxu0 0.0
  %1058 = vmatprep.subr.mxu0 0.0
  %1059 = vmatpush1.msra.mxu0 0.0
  %1060 = vmatprep.subr.mxu0 0.0
  %1061 = vmatpush1.msra.mxu0 0.0
  %1062 = vmatprep.subr.mxu0 0.0
  %1063 = vmatpush1.msra.mxu0 0.0
  %1064 = vmatprep.subr.mxu0 0.0
  %1065 = vmatpush1.msra.mxu0 0.0
  %1066 = vmatprep.subr.mxu0 0.0
  %1067 = vmatpush1.msra.mxu0 0.0
  %1068 = vmatprep.subr.mxu0 0.0
  %1069 = vmatpush1.msra.mxu0 0.0
  %1070 = vmatprep.subr.mxu0 0.0
  %1071 = vmatpush1.msra.mxu0 0.0
  %1072 = vmatprep.subr.mxu0 0.0
  %1073 = vmatpush1.msra.mxu0 0.0
  %1074 = vmatprep.subr.mxu0 0.0
  %1075 = vmatpush1.msra.mxu0 0.0
  %1076 = vmatprep.subr.mxu0 0.0
  %1077 = vmatpush1.msra.mxu0 0.0
  %1078 = vmatprep.subr.mxu0 0.0
  %1079 = vmatpush1.msra.mxu0 0.0
  %1080 = vmatprep.subr.mxu0 0.0
  %1081 = vmatpush1.msra.mxu0 0.0
  %1082 = vmatprep.subr.mxu0 0.0
  %1083 = vmatpush1.msra.mxu0 0.0
  %1084 = vmatprep.subr.mxu0 0.0
  %1085 = vmatpush1.msra.mxu0 0.0
  %1086 = vmatprep.subr.mxu0 0.0
  %1087 = vmatpush1.msra.mxu0 0.0
  %1088 = vmatprep.subr.mxu0 0.0
  %1089 = vmatpush1.msra.mxu0 0.0
  %1090 = vmatprep.subr.mxu0 0.0
  %1091 = vmatpush1.msra.mxu0 0.0
  %1092 = vmatprep.subr.mxu0 0.0
  %1093 = vmatpush1.msra.mxu0 0.0
  %1094 = vmatprep.subr.mxu0 0.0
  %1095 = vmatpush1.msra.mxu0 0.0
  %1096 = vmatprep.subr.mxu0 0.0
  %1097 = vmatpush1.msra.mxu0 0.0
  %1098 = vmatprep.subr.mxu0 0.0
  %1099 = vmatpush1.msra.mxu0 0.0
  %1100 = vmatprep.mubr.f32.mxu0 0.0
  %1101 = vmatmul.mubr.f32.gmra.mrb[0].mxu0 %v1022
  %v1102 = vpop.f32.mrb[0].mxu0
  %v1103 = vadd.f32 0.0, %v1102
  %v1104 = vpop.f32.mrb[0].mxu0
  %1105 = vmatprep.mubr.f32.mxu0 0.0
  %1106 = vmatmul.mubr.f32.gmra.mrb[0].mxu0 %v1025
  %v1107 = vpop.f32.mrb[0].mxu0
  %v1108 = vadd.f32 0.0, %v1107
  %v1109 = vpop.f32.mrb[0].mxu0
  %1110 = vmatprep.mubr.f32.mxu0 0.0
  %1111 = vmatmul.mubr.f32.gmra.mrb[0].mxu0 %v1028
  %v1112 = vpop.f32.mrb[0].mxu0
  %v1113 = vadd.f32 0.0, %v1112
  %v1114 = vpop.f32.mrb[0].mxu0
  %1115 = vmatprep.mubr.f32.mxu0 0.0
  %1116 = vmatmul.mubr.f32.gmra.mrb[0].mxu0 %v1031
  %v1117 = vpop.f32.mrb[0].mxu0
  %v1118 = vadd.f32 0.0, %v1117
  %v1119 = vpop.f32.mrb[0].mxu0
  %1120 = vdwg.mxu0
  %v1121 = vmul.f32 %v938, %v1103
  %v1122 = vmul.f32 %v939, %v1108
  %v1123 = vmul.f32 %v940, %v1113
  %v1124 = vmul.f32 %v941, %v1118
  %v1125 = vsel %vm570, %v1121, 0.0
  %1126 = vadd.xlane.f32.xlu0 %v1125
  %v1127 = vpop.xlane.xlu0 %1126
  %v1128 = vsel %vm570, %v1122, 0.0
  %1129 = vadd.xlane.f32.xlu0 %v1128
  %v1130 = vpop.xlane.xlu0 %1129
  %v1131 = vsel %vm570, %v1123, 0.0
  %1132 = vadd.xlane.f32.xlu0 %v1131
  %v1133 = vpop.xlane.xlu0 %1132
  %v1134 = vsel %vm570, %v1124, 0.0
  %1135 = vadd.xlane.f32.xlu0 %v1134
  %v1136 = vpop.xlane.xlu0 %1135
  %v1137 = vld [vmem:[%s15] sm:$0xff]
  %v1138 = vld [vmem:[%s15 + $0x8] sm:$0xff]
  %v1139 = vld [vmem:[%s16] sm:$0xff]
  %v1140 = vld [vmem:[%s16 + $0x8] sm:$0xff]
  %vm1141 = vcmask 261120
  %v1143 = vsel %vm1141, %v1137, 0
  %v1146 = vsel %vm1141, %v1138, 0
  %1148 = vmatprep.subr.mxu0 0.0
  %1149 = vmatpush1.msra.mxu0 %v1127
  %1150 = vmatprep.subr.mxu0 0.0
  %1151 = vmatpush1.msra.mxu0 %v1130
  %1152 = vmatprep.subr.mxu0 0.0
  %1153 = vmatpush1.msra.mxu0 %v1133
  %1154 = vmatprep.subr.mxu0 0.0
  %1155 = vmatpush1.msra.mxu0 %v1136
  %1156 = vmatprep.subr.mxu0 0.0
  %1157 = vmatpush1.msra.mxu0 0.0
  %1158 = vmatprep.subr.mxu0 0.0
  %1159 = vmatpush1.msra.mxu0 0.0
  %1160 = vmatprep.subr.mxu0 0.0
  %1161 = vmatpush1.msra.mxu0 0.0
  %1162 = vmatprep.subr.mxu0 0.0
  %1163 = vmatpush1.msra.mxu0 0.0
  %1164 = vmatprep.subr.mxu0 0.0
  %1165 = vmatpush1.msra.mxu0 0.0
  %1166 = vmatprep.subr.mxu0 0.0
  %1167 = vmatpush1.msra.mxu0 0.0
  %1168 = vmatprep.subr.mxu0 0.0
  %1169 = vmatpush1.msra.mxu0 0.0
  %1170 = vmatprep.subr.mxu0 0.0
  %1171 = vmatpush1.msra.mxu0 0.0
  %1172 = vmatprep.subr.mxu0 0.0
  %1173 = vmatpush1.msra.mxu0 0.0
  %1174 = vmatprep.subr.mxu0 0.0
  %1175 = vmatpush1.msra.mxu0 0.0
  %1176 = vmatprep.subr.mxu0 0.0
  %1177 = vmatpush1.msra.mxu0 0.0
  %1178 = vmatprep.subr.mxu0 0.0
  %1179 = vmatpush1.msra.mxu0 0.0
  %1180 = vmatprep.subr.mxu0 0.0
  %1181 = vmatpush1.msra.mxu0 0.0
  %1182 = vmatprep.subr.mxu0 0.0
  %1183 = vmatpush1.msra.mxu0 0.0
  %1184 = vmatprep.subr.mxu0 0.0
  %1185 = vmatpush1.msra.mxu0 0.0
  %1186 = vmatprep.subr.mxu0 0.0
  %1187 = vmatpush1.msra.mxu0 0.0
  %1188 = vmatprep.subr.mxu0 0.0
  %1189 = vmatpush1.msra.mxu0 0.0
  %1190 = vmatprep.subr.mxu0 0.0
  %1191 = vmatpush1.msra.mxu0 0.0
  %1192 = vmatprep.subr.mxu0 0.0
  %1193 = vmatpush1.msra.mxu0 0.0
  %1194 = vmatprep.subr.mxu0 0.0
  %1195 = vmatpush1.msra.mxu0 0.0
  %1196 = vmatprep.subr.mxu0 0.0
  %1197 = vmatpush1.msra.mxu0 0.0
  %1198 = vmatprep.subr.mxu0 0.0
  %1199 = vmatpush1.msra.mxu0 0.0
  %1200 = vmatprep.subr.mxu0 0.0
  %1201 = vmatpush1.msra.mxu0 0.0
  %1202 = vmatprep.subr.mxu0 0.0
  %1203 = vmatpush1.msra.mxu0 0.0
  %1204 = vmatprep.subr.mxu0 0.0
  %1205 = vmatpush1.msra.mxu0 0.0
  %1206 = vmatprep.subr.mxu0 0.0
  %1207 = vmatpush1.msra.mxu0 0.0
  %1208 = vmatprep.subr.mxu0 0.0
  %1209 = vmatpush1.msra.mxu0 0.0
  %1210 = vmatprep.subr.mxu0 0.0
  %1211 = vmatpush1.msra.mxu0 0.0
  %1212 = vmatprep.mubr.f32.mxu0 0.0
  %1213 = vmatmul.mubr.f32.gmra.mrb[0].mxu0 %v1143
  %v1214 = vpop.f32.mrb[0].mxu0
  %v1215 = vadd.f32 %v1139, %v1214
  %v1216 = vpop.f32.mrb[0].mxu0
  %1217 = vmatprep.mubr.f32.mxu0 0.0
  %1218 = vmatmul.mubr.f32.gmra.mrb[0].mxu0 %v1146
  %v1219 = vpop.f32.mrb[0].mxu0
  %v1220 = vadd.f32 %v1140, %v1219
  %v1221 = vpop.f32.mrb[0].mxu0
  %1222 = vdwg.mxu0
  %v1223 = vmax.f32 %v1215, 0.0
  %v1224 = vmax.f32 %v1220, 0.0
  %v1225 = vld [vmem:[%s17] sm:$0xff]
  %v1226 = vld [vmem:[%s17 + $0x8] sm:$0xff]
  %v1227 = vld [vmem:[%s17 + $0x10] sm:$0xff]
  %v1228 = vld [vmem:[%s17 + $0x18] sm:$0xff]
  %v1229 = vld [vmem:[%s18] sm:$0xff]
  %v1230 = vld [vmem:[%s18 + $0x8] sm:$0xff]
  %v1231 = vld [vmem:[%s18 + $0x10] sm:$0xff]
  %v1232 = vld [vmem:[%s18 + $0x18] sm:$0xff]
  %v1234 = vsel %vm797, %v1225, 0
  %v1237 = vsel %vm797, %v1226, 0
  %v1240 = vsel %vm797, %v1227, 0
  %v1243 = vsel %vm797, %v1228, 0
  %1245 = vmatprep.subr.mxu0 0.0
  %1246 = vmatpush1.msra.mxu0 %v1223
  %1247 = vmatprep.subr.mxu0 0.0
  %1248 = vmatpush1.msra.mxu0 %v1224
  %1249 = vmatprep.subr.mxu0 0.0
  %1250 = vmatpush1.msra.mxu0 0.0
  %1251 = vmatprep.subr.mxu0 0.0
  %1252 = vmatpush1.msra.mxu0 0.0
  %1253 = vmatprep.subr.mxu0 0.0
  %1254 = vmatpush1.msra.mxu0 0.0
  %1255 = vmatprep.subr.mxu0 0.0
  %1256 = vmatpush1.msra.mxu0 0.0
  %1257 = vmatprep.subr.mxu0 0.0
  %1258 = vmatpush1.msra.mxu0 0.0
  %1259 = vmatprep.subr.mxu0 0.0
  %1260 = vmatpush1.msra.mxu0 0.0
  %1261 = vmatprep.subr.mxu0 0.0
  %1262 = vmatpush1.msra.mxu0 0.0
  %1263 = vmatprep.subr.mxu0 0.0
  %1264 = vmatpush1.msra.mxu0 0.0
  %1265 = vmatprep.subr.mxu0 0.0
  %1266 = vmatpush1.msra.mxu0 0.0
  %1267 = vmatprep.subr.mxu0 0.0
  %1268 = vmatpush1.msra.mxu0 0.0
  %1269 = vmatprep.subr.mxu0 0.0
  %1270 = vmatpush1.msra.mxu0 0.0
  %1271 = vmatprep.subr.mxu0 0.0
  %1272 = vmatpush1.msra.mxu0 0.0
  %1273 = vmatprep.subr.mxu0 0.0
  %1274 = vmatpush1.msra.mxu0 0.0
  %1275 = vmatprep.subr.mxu0 0.0
  %1276 = vmatpush1.msra.mxu0 0.0
  %1277 = vmatprep.subr.mxu0 0.0
  %1278 = vmatpush1.msra.mxu0 0.0
  %1279 = vmatprep.subr.mxu0 0.0
  %1280 = vmatpush1.msra.mxu0 0.0
  %1281 = vmatprep.subr.mxu0 0.0
  %1282 = vmatpush1.msra.mxu0 0.0
  %1283 = vmatprep.subr.mxu0 0.0
  %1284 = vmatpush1.msra.mxu0 0.0
  %1285 = vmatprep.subr.mxu0 0.0
  %1286 = vmatpush1.msra.mxu0 0.0
  %1287 = vmatprep.subr.mxu0 0.0
  %1288 = vmatpush1.msra.mxu0 0.0
  %1289 = vmatprep.subr.mxu0 0.0
  %1290 = vmatpush1.msra.mxu0 0.0
  %1291 = vmatprep.subr.mxu0 0.0
  %1292 = vmatpush1.msra.mxu0 0.0
  %1293 = vmatprep.subr.mxu0 0.0
  %1294 = vmatpush1.msra.mxu0 0.0
  %1295 = vmatprep.subr.mxu0 0.0
  %1296 = vmatpush1.msra.mxu0 0.0
  %1297 = vmatprep.subr.mxu0 0.0
  %1298 = vmatpush1.msra.mxu0 0.0
  %1299 = vmatprep.subr.mxu0 0.0
  %1300 = vmatpush1.msra.mxu0 0.0
  %1301 = vmatprep.subr.mxu0 0.0
  %1302 = vmatpush1.msra.mxu0 0.0
  %1303 = vmatprep.subr.mxu0 0.0
  %1304 = vmatpush1.msra.mxu0 0.0
  %1305 = vmatprep.subr.mxu0 0.0
  %1306 = vmatpush1.msra.mxu0 0.0
  %1307 = vmatprep.subr.mxu0 0.0
  %1308 = vmatpush1.msra.mxu0 0.0
  %1309 = vmatprep.mubr.f32.mxu0 0.0
  %1310 = vmatmul.mubr.f32.gmra.mrb[0].mxu0 %v1234
  %v1311 = vpop.f32.mrb[0].mxu0
  %v1312 = vadd.f32 %v1229, %v1311
  %v1313 = vpop.f32.mrb[0].mxu0
  %1314 = vmatprep.mubr.f32.mxu0 0.0
  %1315 = vmatmul.mubr.f32.gmra.mrb[0].mxu0 %v1237
  %v1316 = vpop.f32.mrb[0].mxu0
  %v1317 = vadd.f32 %v1230, %v1316
  %v1318 = vpop.f32.mrb[0].mxu0
  %1319 = vmatprep.mubr.f32.mxu0 0.0
  %1320 = vmatmul.mubr.f32.gmra.mrb[0].mxu0 %v1240
  %v1321 = vpop.f32.mrb[0].mxu0
  %v1322 = vadd.f32 %v1231, %v1321
  %v1323 = vpop.f32.mrb[0].mxu0
  %1324 = vmatprep.mubr.f32.mxu0 0.0
  %1325 = vmatmul.mubr.f32.gmra.mrb[0].mxu0 %v1243
  %v1326 = vpop.f32.mrb[0].mxu0
  %v1327 = vadd.f32 %v1232, %v1326
  %v1328 = vpop.f32.mrb[0].mxu0
  %1329 = vdwg.mxu0
  %v1330 = vxor.u32 %v1312, 2147483648
  %v1331 = vxor.u32 %v1317, 2147483648
  %v1332 = vxor.u32 %v1322, 2147483648
  %v1333 = vxor.u32 %v1327, 2147483648
  %v1334 = vmul.f32 %v1330, 1.442695
  %v1335 = vpow.pop %v1334
  %v1336 = vmul.f32 %v1331, 1.442695
  %v1337 = vpow.pop %v1336
  %v1338 = vmul.f32 %v1332, 1.442695
  %v1339 = vpow.pop %v1338
  %v1340 = vmul.f32 %v1333, 1.442695
  %v1341 = vpow.pop %v1340
  %v1342 = vadd.f32 %v1335, 1.0
  %v1343 = vadd.f32 %v1337, 1.0
  %v1344 = vadd.f32 %v1339, 1.0
  %v1345 = vadd.f32 %v1341, 1.0
  %v1346 = vrcp.pop %v1342
  %v1347 = vmul.f32 1.0, %v1346
  %v1348 = vrcp.pop %v1343
  %v1349 = vmul.f32 1.0, %v1348
  %v1350 = vrcp.pop %v1344
  %v1351 = vmul.f32 1.0, %v1350
  %v1352 = vrcp.pop %v1345
  %v1353 = vmul.f32 1.0, %v1352
  %v1354 = vld [vmem:[%s14] sm:$0xf]
  %1356 = vset.pattern.permute.xlu0 0
  %1357 = vperm.xlu0 %1356, %v1347
  %v1358 = vpop.permute.xlu0 %1357
  %1361 = vset.pattern.permute.xlu0 0
  %1362 = vperm.xlu0 %1361, %v1349
  %v1363 = vpop.permute.xlu0 %1362
  %1366 = vset.pattern.permute.xlu0 0
  %1367 = vperm.xlu0 %1366, %v1351
  %v1368 = vpop.permute.xlu0 %1367
  %1371 = vset.pattern.permute.xlu0 0
  %1372 = vperm.xlu0 %1371, %v1353
  %v1373 = vpop.permute.xlu0 %1372
  %v1375 = vmul.f32 %v1358, %v938
  %v1376 = vmul.f32 %v1363, %v939
  %v1377 = vmul.f32 %v1368, %v940
  %v1378 = vmul.f32 %v1373, %v941
  %v1380 = vsel %vm1141, %v1354, 0
  %1382 = vmatprep.subr.mxu0 0.0
  %1383 = vmatpush1.msra.mxu0 %v1375
  %1384 = vmatprep.subr.mxu0 0.0
  %1385 = vmatpush1.msra.mxu0 %v1376
  %1386 = vmatprep.subr.mxu0 0.0
  %1387 = vmatpush1.msra.mxu0 %v1377
  %1388 = vmatprep.subr.mxu0 0.0
  %1389 = vmatpush1.msra.mxu0 %v1378
  %1390 = vmatprep.subr.mxu0 0.0
  %1391 = vmatpush1.msra.mxu0 0.0
  %1392 = vmatprep.subr.mxu0 0.0
  %1393 = vmatpush1.msra.mxu0 0.0
  %1394 = vmatprep.subr.mxu0 0.0
  %1395 = vmatpush1.msra.mxu0 0.0
  %1396 = vmatprep.subr.mxu0 0.0
  %1397 = vmatpush1.msra.mxu0 0.0
  %1398 = vmatprep.subr.mxu0 0.0
  %1399 = vmatpush1.msra.mxu0 0.0
  %1400 = vmatprep.subr.mxu0 0.0
  %1401 = vmatpush1.msra.mxu0 0.0
  %1402 = vmatprep.subr.mxu0 0.0
  %1403 = vmatpush1.msra.mxu0 0.0
  %1404 = vmatprep.subr.mxu0 0.0
  %1405 = vmatpush1.msra.mxu0 0.0
  %1406 = vmatprep.subr.mxu0 0.0
  %1407 = vmatpush1.msra.mxu0 0.0
  %1408 = vmatprep.subr.mxu0 0.0
  %1409 = vmatpush1.msra.mxu0 0.0
  %1410 = vmatprep.subr.mxu0 0.0
  %1411 = vmatpush1.msra.mxu0 0.0
  %1412 = vmatprep.subr.mxu0 0.0
  %1413 = vmatpush1.msra.mxu0 0.0
  %1414 = vmatprep.subr.mxu0 0.0
  %1415 = vmatpush1.msra.mxu0 0.0
  %1416 = vmatprep.subr.mxu0 0.0
  %1417 = vmatpush1.msra.mxu0 0.0
  %1418 = vmatprep.subr.mxu0 0.0
  %1419 = vmatpush1.msra.mxu0 0.0
  %1420 = vmatprep.subr.mxu0 0.0
  %1421 = vmatpush1.msra.mxu0 0.0
  %1422 = vmatprep.subr.mxu0 0.0
  %1423 = vmatpush1.msra.mxu0 0.0
  %1424 = vmatprep.subr.mxu0 0.0
  %1425 = vmatpush1.msra.mxu0 0.0
  %1426 = vmatprep.subr.mxu0 0.0
  %1427 = vmatpush1.msra.mxu0 0.0
  %1428 = vmatprep.subr.mxu0 0.0
  %1429 = vmatpush1.msra.mxu0 0.0
  %1430 = vmatprep.subr.mxu0 0.0
  %1431 = vmatpush1.msra.mxu0 0.0
  %1432 = vmatprep.subr.mxu0 0.0
  %1433 = vmatpush1.msra.mxu0 0.0
  %1434 = vmatprep.subr.mxu0 0.0
  %1435 = vmatpush1.msra.mxu0 0.0
  %1436 = vmatprep.subr.mxu0 0.0
  %1437 = vmatpush1.msra.mxu0 0.0
  %1438 = vmatprep.subr.mxu0 0.0
  %1439 = vmatpush1.msra.mxu0 0.0
  %1440 = vmatprep.subr.mxu0 0.0
  %1441 = vmatpush1.msra.mxu0 0.0
  %1442 = vmatprep.subr.mxu0 0.0
  %1443 = vmatpush1.msra.mxu0 0.0
  %1444 = vmatprep.subr.mxu0 0.0
  %1445 = vmatpush1.msra.mxu0 0.0
  %1446 = vmatprep.mubr.f32.mxu0 0.0
  %1447 = vmatmul.mubr.f32.gmra.mrb[0].mxu0 %v1380
  %v1448 = vpop.f32.mrb[0].mxu0
  %v1449 = vadd.f32 0.0, %v1448
  %v1450 = vpop.f32.mrb[0].mxu0
  %1451 = vdwg.mxu0
  %v1452 = vld [vmem:[%s19] sm:$0xff]
  %v1453 = vld [vmem:[%s20] sm:$0xff]
  %1454 = vmatprep.subr.mxu0 0.0
  %1455 = vmatpush1.msra.mxu0 %v1453
  %1456 = vmatprep.subr.mxu0 0.0
  %1457 = vmatpush1.msra.mxu0 0.0
  %1458 = vmatprep.subr.mxu0 0.0
  %1459 = vmatpush1.msra.mxu0 0.0
  %1460 = vmatprep.subr.mxu0 0.0
  %1461 = vmatpush1.msra.mxu0 0.0
  %1462 = vmatprep.subr.mxu0 0.0
  %1463 = vmatpush1.msra.mxu0 0.0
  %1464 = vmatprep.subr.mxu0 0.0
  %1465 = vmatpush1.msra.mxu0 0.0
  %1466 = vmatprep.subr.mxu0 0.0
  %1467 = vmatpush1.msra.mxu0 0.0
  %1468 = vmatprep.subr.mxu0 0.0
  %1469 = vmatpush1.msra.mxu0 0.0
  %1470 = vmatprep.subr.mxu0 0.0
  %1471 = vmatpush1.msra.mxu0 0.0
  %1472 = vmatprep.subr.mxu0 0.0
  %1473 = vmatpush1.msra.mxu0 0.0
  %1474 = vmatprep.subr.mxu0 0.0
  %1475 = vmatpush1.msra.mxu0 0.0
  %1476 = vmatprep.subr.mxu0 0.0
  %1477 = vmatpush1.msra.mxu0 0.0
  %1478 = vmatprep.subr.mxu0 0.0
  %1479 = vmatpush1.msra.mxu0 0.0
  %1480 = vmatprep.subr.mxu0 0.0
  %1481 = vmatpush1.msra.mxu0 0.0
  %1482 = vmatprep.subr.mxu0 0.0
  %1483 = vmatpush1.msra.mxu0 0.0
  %1484 = vmatprep.subr.mxu0 0.0
  %1485 = vmatpush1.msra.mxu0 0.0
  %1486 = vmatprep.subr.mxu0 0.0
  %1487 = vmatpush1.msra.mxu0 0.0
  %1488 = vmatprep.subr.mxu0 0.0
  %1489 = vmatpush1.msra.mxu0 0.0
  %1490 = vmatprep.subr.mxu0 0.0
  %1491 = vmatpush1.msra.mxu0 0.0
  %1492 = vmatprep.subr.mxu0 0.0
  %1493 = vmatpush1.msra.mxu0 0.0
  %1494 = vmatprep.subr.mxu0 0.0
  %1495 = vmatpush1.msra.mxu0 0.0
  %1496 = vmatprep.subr.mxu0 0.0
  %1497 = vmatpush1.msra.mxu0 0.0
  %1498 = vmatprep.subr.mxu0 0.0
  %1499 = vmatpush1.msra.mxu0 0.0
  %1500 = vmatprep.subr.mxu0 0.0
  %1501 = vmatpush1.msra.mxu0 0.0
  %1502 = vmatprep.subr.mxu0 0.0
  %1503 = vmatpush1.msra.mxu0 0.0
  %1504 = vmatprep.subr.mxu0 0.0
  %1505 = vmatpush1.msra.mxu0 0.0
  %1506 = vmatprep.subr.mxu0 0.0
  %1507 = vmatpush1.msra.mxu0 0.0
  %1508 = vmatprep.subr.mxu0 0.0
  %1509 = vmatpush1.msra.mxu0 0.0
  %1510 = vmatprep.subr.mxu0 0.0
  %1511 = vmatpush1.msra.mxu0 0.0
  %1512 = vmatprep.subr.mxu0 0.0
  %1513 = vmatpush1.msra.mxu0 0.0
  %1514 = vmatprep.subr.mxu0 0.0
  %1515 = vmatpush1.msra.mxu0 0.0
  %1516 = vmatprep.subr.mxu0 0.0
  %1517 = vmatpush1.msra.mxu0 0.0
  %1518 = vmatprep.mubr.f32.mxu0 0.0
  %1519 = vmatmul.mubr.f32.gmra.mrb[0].mxu0 %v945
  %v1520 = vpop.f32.mrb[0].mxu0
  %v1521 = vadd.f32 0.0, %v1520
  %v1522 = vpop.f32.mrb[0].mxu0
  %1523 = vdwg.mxu0
  %v1525 = vsel %vm570, %v1449, 0
  %1527 = vmatprep.subr.mxu0 0.0
  %1528 = vmatpush1.msra.mxu0 %v1452
  %1529 = vmatprep.subr.mxu0 0.0
  %1530 = vmatpush1.msra.mxu0 0.0
  %1531 = vmatprep.subr.mxu0 0.0
  %1532 = vmatpush1.msra.mxu0 0.0
  %1533 = vmatprep.subr.mxu0 0.0
  %1534 = vmatpush1.msra.mxu0 0.0
  %1535 = vmatprep.subr.mxu0 0.0
  %1536 = vmatpush1.msra.mxu0 0.0
  %1537 = vmatprep.subr.mxu0 0.0
  %1538 = vmatpush1.msra.mxu0 0.0
  %1539 = vmatprep.subr.mxu0 0.0
  %1540 = vmatpush1.msra.mxu0 0.0
  %1541 = vmatprep.subr.mxu0 0.0
  %1542 = vmatpush1.msra.mxu0 0.0
  %1543 = vmatprep.subr.mxu0 0.0
  %1544 = vmatpush1.msra.mxu0 0.0
  %1545 = vmatprep.subr.mxu0 0.0
  %1546 = vmatpush1.msra.mxu0 0.0
  %1547 = vmatprep.subr.mxu0 0.0
  %1548 = vmatpush1.msra.mxu0 0.0
  %1549 = vmatprep.subr.mxu0 0.0
  %1550 = vmatpush1.msra.mxu0 0.0
  %1551 = vmatprep.subr.mxu0 0.0
  %1552 = vmatpush1.msra.mxu0 0.0
  %1553 = vmatprep.subr.mxu0 0.0
  %1554 = vmatpush1.msra.mxu0 0.0
  %1555 = vmatprep.subr.mxu0 0.0
  %1556 = vmatpush1.msra.mxu0 0.0
  %1557 = vmatprep.subr.mxu0 0.0
  %1558 = vmatpush1.msra.mxu0 0.0
  %1559 = vmatprep.subr.mxu0 0.0
  %1560 = vmatpush1.msra.mxu0 0.0
  %1561 = vmatprep.subr.mxu0 0.0
  %1562 = vmatpush1.msra.mxu0 0.0
  %1563 = vmatprep.subr.mxu0 0.0
  %1564 = vmatpush1.msra.mxu0 0.0
  %1565 = vmatprep.subr.mxu0 0.0
  %1566 = vmatpush1.msra.mxu0 0.0
  %1567 = vmatprep.subr.mxu0 0.0
  %1568 = vmatpush1.msra.mxu0 0.0
  %1569 = vmatprep.subr.mxu0 0.0
  %1570 = vmatpush1.msra.mxu0 0.0
  %1571 = vmatprep.subr.mxu0 0.0
  %1572 = vmatpush1.msra.mxu0 0.0
  %1573 = vmatprep.subr.mxu0 0.0
  %1574 = vmatpush1.msra.mxu0 0.0
  %1575 = vmatprep.subr.mxu0 0.0
  %1576 = vmatpush1.msra.mxu0 0.0
  %1577 = vmatprep.subr.mxu0 0.0
  %1578 = vmatpush1.msra.mxu0 0.0
  %1579 = vmatprep.subr.mxu0 0.0
  %1580 = vmatpush1.msra.mxu0 0.0
  %1581 = vmatprep.subr.mxu0 0.0
  %1582 = vmatpush1.msra.mxu0 0.0
  %1583 = vmatprep.subr.mxu0 0.0
  %1584 = vmatpush1.msra.mxu0 0.0
  %1585 = vmatprep.subr.mxu0 0.0
  %1586 = vmatpush1.msra.mxu0 0.0
  %1587 = vmatprep.subr.mxu0 0.0
  %1588 = vmatpush1.msra.mxu0 0.0
  %1589 = vmatprep.subr.mxu0 0.0
  %1590 = vmatpush1.msra.mxu0 0.0
  %1591 = vmatprep.mubr.f32.mxu0 0.0
  %1592 = vmatmul.mubr.f32.gmra.mrb[0].mxu0 %v1525
  %v1593 = vpop.f32.mrb[0].mxu0
  %v1594 = vadd.f32 %v1521, %v1593
  %v1595 = vpop.f32.mrb[0].mxu0
  %1596 = vdwg.mxu0
  %v1597 = vld [vmem:[%s21] sm:$0x1]
  %v1599 = vlaneseq
  %v1600 = vshrl.u32 %v1599, 7
  %v1601 = vsub.s32 0, %v1600
  %v1602 = vrot.slane %v1597, %v1601
  %v1604 = vadd.f32 %v1594, %v1602
  %v1605 = vmax.f32 %v1604, 0.0
  %v1606 = vld [vmem:[%s22] sm:$0xff]
  %v1607 = vld [vmem:[#allocation2] sm:$0x1]
  %v1609 = vlaneseq
  %v1610 = vshrl.u32 %v1609, 7
  %v1611 = vsub.s32 0, %v1610
  %v1612 = vrot.slane %v1607, %v1611
  %v1615 = vsel %vm570, %v1605, 0
  %1617 = vmatprep.subr.mxu0 0.0
  %1618 = vmatpush1.msra.mxu0 %v1606
  %1619 = vmatprep.subr.mxu0 0.0
  %1620 = vmatpush1.msra.mxu0 0.0
  %1621 = vmatprep.subr.mxu0 0.0
  %1622 = vmatpush1.msra.mxu0 0.0
  %1623 = vmatprep.subr.mxu0 0.0
  %1624 = vmatpush1.msra.mxu0 0.0
  %1625 = vmatprep.subr.mxu0 0.0
  %1626 = vmatpush1.msra.mxu0 0.0
  %1627 = vmatprep.subr.mxu0 0.0
  %1628 = vmatpush1.msra.mxu0 0.0
  %1629 = vmatprep.subr.mxu0 0.0
  %1630 = vmatpush1.msra.mxu0 0.0
  %1631 = vmatprep.subr.mxu0 0.0
  %1632 = vmatpush1.msra.mxu0 0.0
  %1633 = vmatprep.subr.mxu0 0.0
  %1634 = vmatpush1.msra.mxu0 0.0
  %1635 = vmatprep.subr.mxu0 0.0
  %1636 = vmatpush1.msra.mxu0 0.0
  %1637 = vmatprep.subr.mxu0 0.0
  %1638 = vmatpush1.msra.mxu0 0.0
  %1639 = vmatprep.subr.mxu0 0.0
  %1640 = vmatpush1.msra.mxu0 0.0
  %1641 = vmatprep.subr.mxu0 0.0
  %1642 = vmatpush1.msra.mxu0 0.0
  %1643 = vmatprep.subr.mxu0 0.0
  %1644 = vmatpush1.msra.mxu0 0.0
  %1645 = vmatprep.subr.mxu0 0.0
  %1646 = vmatpush1.msra.mxu0 0.0
  %1647 = vmatprep.subr.mxu0 0.0
  %1648 = vmatpush1.msra.mxu0 0.0
  %1649 = vmatprep.subr.mxu0 0.0
  %1650 = vmatpush1.msra.mxu0 0.0
  %1651 = vmatprep.subr.mxu0 0.0
  %1652 = vmatpush1.msra.mxu0 0.0
  %1653 = vmatprep.subr.mxu0 0.0
  %1654 = vmatpush1.msra.mxu0 0.0
  %1655 = vmatprep.subr.mxu0 0.0
  %1656 = vmatpush1.msra.mxu0 0.0
  %1657 = vmatprep.subr.mxu0 0.0
  %1658 = vmatpush1.msra.mxu0 0.0
  %1659 = vmatprep.subr.mxu0 0.0
  %1660 = vmatpush1.msra.mxu0 0.0
  %1661 = vmatprep.subr.mxu0 0.0
  %1662 = vmatpush1.msra.mxu0 0.0
  %1663 = vmatprep.subr.mxu0 0.0
  %1664 = vmatpush1.msra.mxu0 0.0
  %1665 = vmatprep.subr.mxu0 0.0
  %1666 = vmatpush1.msra.mxu0 0.0
  %1667 = vmatprep.subr.mxu0 0.0
  %1668 = vmatpush1.msra.mxu0 0.0
  %1669 = vmatprep.subr.mxu0 0.0
  %1670 = vmatpush1.msra.mxu0 0.0
  %1671 = vmatprep.subr.mxu0 0.0
  %1672 = vmatpush1.msra.mxu0 0.0
  %1673 = vmatprep.subr.mxu0 0.0
  %1674 = vmatpush1.msra.mxu0 0.0
  %1675 = vmatprep.subr.mxu0 0.0
  %1676 = vmatpush1.msra.mxu0 0.0
  %1677 = vmatprep.subr.mxu0 0.0
  %1678 = vmatpush1.msra.mxu0 0.0
  %1679 = vmatprep.subr.mxu0 0.0
  %1680 = vmatpush1.msra.mxu0 0.0
  %1681 = vmatprep.mubr.f32.mxu0 0.0
  %1682 = vmatmul.mubr.f32.gmra.mrb[0].mxu0 %v1615
  %v1683 = vpop.f32.mrb[0].mxu0
  %v1684 = vadd.f32 %v1612, %v1683
  %v1685 = vpop.f32.mrb[0].mxu0
  %1686 = vdwg.mxu0
  %v1687 = vxor.u32 %v1684, 2147483648
  %v1688 = vmul.f32 %v1687, 1.442695
  %v1689 = vpow.pop %v1688
  %v1690 = vadd.f32 %v1689, 1.0
  %v1691 = vrcp.pop %v1690
  %v1692 = vmul.f32 1.0, %v1691
  %vm1693 = vcmask 3072
  %1694 = vst.msk [vmem:[%s24] sm:$0xf] %vm1693, %v1692
  // Predicated region
  $region98: #{tbsm_forward.1} parent=0 // pred_check
    _
  $region99: #{tbsm_forward.1} parent=0 // pred_check_branch
    %1696 = sbr.rel (0) target = $region101
  $region100: #{tbsm_forward.1} parent=0 // pred_region
    _
  $region101: #{tbsm_forward.1} parent=0 // pred_fallthru
    _
  // Predicated region
  $region102: #{tbsm_forward.1} parent=0 // pred_check
    _
  $region103: #{tbsm_forward.1} parent=0 // pred_check_branch
    %1698 = sbr.rel (0) target = $region105
  $region104: #{tbsm_forward.1} parent=0 // pred_region
    _
  $region105: #{tbsm_forward.1} parent=0 // pred_fallthru
    _

</llo_original>
